<compile_context>
chip_gen: v5e
topology: v5e:2x2
jax: 0.10.0
libtpu: 0.0.40
codegen_flags: <defaults>
</compile_context>

<pallas_src>
import math
import functools

import jax
import jax.numpy as jnp
from jax import lax
from jax.experimental import pallas as pl
from jax.experimental.pallas import tpu as pltpu

K_GROUP = 4
TB = 8  # time-block height = sublane count


# ----------------------------------------------------------------------------
# Pallas kernel: per (batch, L-chunk) grid point, with all K directions packed
# on the lane axis (lane j = k*Din + d for (L, K*Din) tensors, and
# lane j = n*K*Din + k*Din + d for the state-expanded (L, N*K*Din) tensors):
#   proj  = u @ W_all   (bf16 MXU, f32 acc)  -> [dts | B_t expanded | C_t expanded]
#   delta = softplus(dts + bias)
#   h_t   = exp(delta_t * A) * h_{t-1} + delta_t * B_t * u_t     (blocked scan)
#   y_t   = sum_n (h_t * C_t)[n-slice] + D * u_t
# ----------------------------------------------------------------------------
def _ssm_kernel(xs_ref, w_ref, aflat_ref, ds_ref, dtb_ref,   # inputs
                y_ref,                                        # output
                h_sc, da_sc, dbu_sc, c_sc,                    # scratch
                *, N, KD, NKD):
    LC = y_ref.shape[0]

    # ---------------- prologue: one MXU matmul + lane-aligned slab writes ----
    u = xs_ref[...]                                    # (LC, KD) f32
    u_bf = u.astype(jnp.bfloat16)

    # columns [0,KD): folded dt projection; [KD,KD+NKD): B_t lane-expanded;
    # [KD+NKD, KD+2*NKD): C_t lane-expanded -- all produced by the MXU.
    proj = jnp.dot(u_bf, w_ref[...], preferred_element_type=jnp.float32)

    dts = proj[:, 0:KD]                                # (LC, KD)
    delta = jax.nn.softplus(dts + dtb_ref[...])        # (LC, KD) f32
    du = delta * u                                     # (LC, KD)

    # Per-state 128-lane-aligned, full-vreg stores (no concatenates / temps).
    for n in range(N):
        lo = n * KD
        da_sc[:, lo:lo + KD] = jnp.exp(delta * aflat_ref[:, lo:lo + KD])
        dbu_sc[:, lo:lo + KD] = proj[:, KD + lo:KD + lo + KD] * du
    c_sc[...] = proj[:, KD + NKD:KD + 2 * NKD]

    # SSM state carried across L-chunks in persistent VMEM scratch.
    @pl.when(pl.program_id(1) == 0)
    def _init_state():
        h_sc[...] = jnp.zeros_like(h_sc)

    ds_b = jnp.broadcast_to(ds_ref[...], (TB, KD))     # hoisted broadcast

    # ---------------- blocked recurrence (TB=8 time steps per iteration) ----
    # Hillis-Steele inclusive scan over the sublane axis on full (TB, NKD)
    # slabs: 3 rounds of shifted full-vreg mul/add, then a single carry-in
    # apply, a lane-aligned reduction over the N state slices and one dense
    # (TB, KD) output store with the D*u skip folded in.
    def blk_step(blk, h_row):                          # h_row: (1, NKD)
        base = pl.multiple_of(blk * TB, TB)
        a = da_sc[pl.ds(base, TB), :]                  # (TB, NKD) dense load
        b = dbu_sc[pl.ds(base, TB), :]
        shift = 1
        while shift < TB:                              # static: 1, 2, 4
            a_sh = jnp.concatenate(
                [jnp.ones((shift, NKD), jnp.float32), a[:TB - shift, :]], axis=0)
            b_sh = jnp.concatenate(
                [jnp.zeros((shift, NKD), jnp.float32), b[:TB - shift, :]], axis=0)
            b = a * b_sh + b                           # compose (later o earlier)
            a = a * a_sh
            shift *= 2
        # h_t = a[t] * h_carry + b[t] for all TB rows at once.
        h_all = a * jnp.broadcast_to(h_row, (TB, NKD)) + b
        c_blk = c_sc[pl.ds(base, TB), :]
        hc = h_all * c_blk
        y = hc[:, 0:KD]
        for n in range(1, N):                          # 128-aligned full-vreg adds
            y = y + hc[:, n * KD:(n + 1) * KD]
        u_blk = xs_ref[pl.ds(base, TB), :]             # (TB, KD) f32
        y_ref[pl.ds(base, TB), :] = y + u_blk * ds_b   # dense (TB, KD) store
        return h_all[TB - 1:TB, :]                     # new carry

    h_final = lax.fori_loop(0, LC // TB, blk_step, h_sc[...], unroll=False)
    h_sc[...] = h_final


# ----------------------------------------------------------------------------
# Glue: CrossScan / CrossMerge (pure reshapes / flips / transposes)
# ----------------------------------------------------------------------------
def cross_scan(x):
    B, D, H, W = x.shape
    L = H * W
    xs0 = x.reshape(B, D, L)
    xs1 = jnp.transpose(x, (0, 1, 3, 2)).reshape(B, D, L)
    xs01 = jnp.stack([xs0, xs1], axis=1)                       # (B, 2, D, L)
    return jnp.concatenate([xs01, jnp.flip(xs01, axis=-1)], axis=1)  # (B, 4, D, L)


def cross_merge(ys, H, W):
    # TODO(synk): CrossMerge_onnx body is not in the provided snippet; this is
    # the standard VMamba inverse of CrossScan_onnx (check H/W order if H != W).
    B, K, D, L = ys.shape
    ys = ys[:, 0:2] + jnp.flip(ys[:, 2:4], axis=-1)            # (B, 2, D, L)
    y = ys[:, 0] + jnp.transpose(
        ys[:, 1].reshape(B, D, W, H), (0, 1, 3, 2)).reshape(B, D, L)
    return y.reshape(B, D, H, W)


# ----------------------------------------------------------------------------
# Forward pass (equivalent of sub_model.forward on the CustomSelectiveScan path)
# ----------------------------------------------------------------------------
def ss2d_forward(x, params, lc=None):
    B, Din, H, W = x.shape
    L = H * W
    K = K_GROUP
    KD = K * Din
    xpw = params["x_proj_weight"].astype(jnp.float32)      # (K, R+2N, Din)
    dtw = params["dt_projs_weight"].astype(jnp.float32)    # (K, Din, R)
    dtb = params["dt_projs_bias"].astype(jnp.float32)      # (K, Din)
    A_logs = params["A_logs"]                              # (K*Din, N)
    Ds = params["Ds"]                                      # (K*Din,)
    R = dtw.shape[-1]
    N = A_logs.shape[-1]
    NKD = N * KD

    assert L % TB == 0, "H*W must be a multiple of 8"
    if lc is None:                                         # largest chunk <= 512
        lc = TB
        for cand in range(TB, min(L, 512) + 1, TB):
            if L % cand == 0:
                lc = cand
    assert L % lc == 0 and lc % TB == 0

    # CrossScan, then fold K onto the channel/lane axis: lane j = k*Din + d.
    # xs stays f32 (full-precision recurrence / skip); cast to bf16 in-kernel
    # only for the MXU matmul.
    xs = cross_scan(x.astype(jnp.float32))                         # (B, K, Din, L)
    xs_k = jnp.transpose(xs, (0, 3, 1, 2)).reshape(B, L, KD)       # (B, L, K*Din)

    # Combined projection weight (precomputed once, DMA'd once):
    #   cols [0,KD): block-diag fold of dt_proj @ x_proj[:R]    (dt path)
    #   cols [KD,KD+NKD): B rows, lane-expanded to n*KD+k*Din+d (all d identical)
    #   cols [KD+NKD,KD+2NKD): C rows, lane-expanded likewise
    eyeK = jnp.eye(K, dtype=jnp.float32)
    onesD = jnp.ones((Din,), jnp.float32)
    M = jnp.einsum("kdr,kre->kde", dtw, xpw[:, :R, :])             # (K, Din, Din)
    w_dt = jnp.einsum("kde,kq->qekd", M, eyeK).reshape(KD, KD)
    bw = xpw[:, R:R + N, :]                                        # (K, N, Din)
    cw = xpw[:, R + N:R + 2 * N, :]                                # (K, N, Din)
    w_b = jnp.einsum("kne,kq,d->qenkd", bw, eyeK, onesD).reshape(KD, NKD)
    w_c = jnp.einsum("kne,kq,d->qenkd", cw, eyeK, onesD).reshape(KD, NKD)
    w_all = jnp.concatenate([w_dt, w_b, w_c], axis=1).astype(jnp.bfloat16)

    A = -jnp.exp(A_logs.astype(jnp.float32))                       # (K*Din, N)
    aflat = jnp.transpose(A).reshape(1, NKD)                       # lane n*KD+k*Din+d
    ds2 = Ds.astype(jnp.float32).reshape(1, KD)
    dtb2 = dtb.reshape(1, KD)

    kern = functools.partial(_ssm_kernel, N=N, KD=KD, NKD=NKD)
    ys = pl.pallas_call(
        kern,
        out_shape=jax.ShapeDtypeStruct((B, L, KD), jnp.float32),
        grid_spec=pltpu.PrefetchScalarGridSpec(
            num_scalar_prefetch=0,
            grid=(B, L // lc),
            in_specs=[
                pl.BlockSpec((None, lc, KD), lambda b, c: (b, c, 0)),
                pl.BlockSpec((KD, KD + 2 * NKD), lambda b, c: (0, 0)),
                pl.BlockSpec((1, NKD), lambda b, c: (0, 0)),
                pl.BlockSpec((1, KD), lambda b, c: (0, 0)),
                pl.BlockSpec((1, KD), lambda b, c: (0, 0)),
            ],
            out_specs=pl.BlockSpec((None, lc, KD), lambda b, c: (b, c, 0)),
            scratch_shapes=[
                pltpu.VMEM((1, NKD), jnp.float32),    # h carry (across chunks)
                pltpu.VMEM((lc, NKD), jnp.float32),   # exp(delta * A)
                pltpu.VMEM((lc, NKD), jnp.float32),   # delta * B * u
                pltpu.VMEM((lc, NKD), jnp.float32),   # C expanded
            ]),
        compiler_params=pltpu.CompilerParams(
            dimension_semantics=("parallel", "arbitrary"),
            vmem_limit_bytes=48 * 1024 * 1024),
    )(xs_k, w_all, aflat, ds2, dtb2)

    ys = jnp.transpose(ys.reshape(B, L, K, Din), (0, 2, 3, 1))     # (B, K, Din, L)
    return cross_merge(ys, H, W)                                   # (B, Din, H, W)


# ----------------------------------------------------------------------------
# Pure-JAX reference (selective_scan_ref semantics, delta_softplus=True)
# ----------------------------------------------------------------------------
def _ref_selective_scan(u, delta, A, Bm, Cm, D, delta_bias):
    Bsz, KD, L = u.shape
    K = Bm.shape[1]
    N = A.shape[1]
    dper = KD // K
    delta = jax.nn.softplus(delta + delta_bias[None, :, None])
    Bfull = jnp.swapaxes(jnp.repeat(Bm, dper, axis=1), -1, -2)     # (Bsz, KD, L, N)
    Cfull = jnp.swapaxes(jnp.repeat(Cm, dper, axis=1), -1, -2)     # (Bsz, KD, L, N)
    dA = jnp.exp(delta[..., None] * A[None, :, None, :])           # (Bsz, KD, L, N)
    dBu = (delta * u)[..., None] * Bfull                           # (Bsz, KD, L, N)

    def step(h, inp):
        dA_t, dBu_t, C_t = inp
        h = dA_t * h + dBu_t
        return h, jnp.sum(h * C_t, axis=-1)

    h0 = jnp.zeros((Bsz, KD, N), jnp.float32)
    _, ys = lax.scan(step, h0, (jnp.moveaxis(dA, 2, 0),
                                jnp.moveaxis(dBu, 2, 0),
                                jnp.moveaxis(Cfull, 2, 0)))
    ys = jnp.moveaxis(ys, 0, -1)                                   # (Bsz, KD, L)
    return ys + u * D[None, :, None]


def ref_forward(x, params):
    B, Din, H, W = x.shape
    L = H * W
    K = K_GROUP
    R = params["dt_projs_weight"].shape[-1]
    N = params["A_logs"].shape[-1]
    xs = cross_scan(x.astype(jnp.float32))                         # (B, K, Din, L)
    x_dbl = jnp.einsum("bkdl,kpd->bkpl", xs, params["x_proj_weight"])
    dts, Bs, Cs = x_dbl[:, :, :R], x_dbl[:, :, R:R + N], x_dbl[:, :, R + N:]
    dts = jnp.einsum("bkrl,kdr->bkdl", dts, params["dt_projs_weight"])
    u = xs.reshape(B, K * Din, L)
    delta = dts.reshape(B, K * Din, L)
    A = -jnp.exp(params["A_logs"].astype(jnp.float32))
    ys = _ref_selective_scan(u, delta, A, Bs, Cs, params["Ds"],
                             params["dt_projs_bias"].reshape(-1))
    return cross_merge(ys.reshape(B, K, Din, L), H, W)


# ----------------------------------------------------------------------------
# Deterministic parameter init (mirrors mamba_init shapes)
# ----------------------------------------------------------------------------
def init_params(key, d_inner, d_state, dt_rank, K=K_GROUP, dt_scale=1.0,
                dt_min=1e-3, dt_max=0.1, dt_init_floor=1e-4):
    kx, kdt, kb = jax.random.split(key, 3)
    P = dt_rank + 2 * d_state
    x_proj_weight = jax.random.normal(kx, (K, P, d_inner), jnp.float32) * (d_inner ** -0.5)
    dt_init_std = dt_rank ** -0.5 * dt_scale
    dt_projs_weight = jax.random.uniform(kdt, (K, d_inner, dt_rank), jnp.float32,
                                         -dt_init_std, dt_init_std)
    u = jax.random.uniform(kb, (K, d_inner), jnp.float32)
    dt = jnp.exp(u * (math.log(dt_max) - math.log(dt_min)) + math.log(dt_min))
    dt = jnp.maximum(dt, dt_init_floor)
    dt_projs_bias = dt + jnp.log(-jnp.expm1(-dt))          # inverse softplus
    A = jnp.tile(jnp.arange(1, d_state + 1, dtype=jnp.float32)[None, :], (K * d_inner, 1))
    return dict(x_proj_weight=x_proj_weight,
                dt_projs_weight=dt_projs_weight,
                dt_projs_bias=dt_projs_bias,
                A_logs=jnp.log(A),
                Ds=jnp.ones((K * d_inner,), jnp.float32))


if __name__ == "__main__":
    # small shapes: d_inner=32 (K*Din = 128 lanes), d_state=8, dt_rank=2,
    # K=4, H=W=8 (L=64, chunked as 2 chunks of 32 to exercise the carried
    # state), batch=2 (feeds both TCs on v7x megacore).
    B, D_INNER, H, W = 2, 32, 8, 8
    D_STATE, DT_RANK = 8, 2

    key = jax.random.PRNGKey(0)
    kp, kx = jax.random.split(key)
    params = init_params(kp, D_INNER, D_STATE, DT_RANK)
    x = jax.random.normal(kx, (B, D_INNER, H, W), jnp.float32)   # NCHW like PyTorch

    fwd = jax.jit(functools.partial(ss2d_forward, lc=32))
    y = fwd(x, params)
    y = jax.block_until_ready(y)
    assert y.shape == (B, D_INNER, H, W) and y.dtype == jnp.float32

    y_ref = jax.jit(ref_forward)(x, params)
    y_ref = jax.block_until_ready(y_ref)
    err = float(jnp.max(jnp.abs(y - y_ref)))
    scale = float(jnp.max(jnp.abs(y_ref))) + 1e-6
    assert err <= 5e-2 * max(1.0, scale), f"kernel/reference mismatch: {err}"

    print("KERNEL_OK")
</pallas_src>

<mosaic_0001>
module attributes {stable_mosaic.version = 11 : i64} {
  func.func @_ssm_kernel(%arg0: i32, %arg1: i32, %arg2: memref<1x32x128xf32, #tpu.memory_space<vmem>>, %arg3: memref<128x2176xbf16, #tpu.memory_space<vmem>>, %arg4: memref<1x1024xf32, #tpu.memory_space<vmem>>, %arg5: memref<1x128xf32, #tpu.memory_space<vmem>>, %arg6: memref<1x128xf32, #tpu.memory_space<vmem>>, %arg7: memref<1x32x128xf32, #tpu.memory_space<vmem>>, %arg8: memref<1x1024xf32, #tpu.memory_space<vmem>>, %arg9: memref<32x1024xf32, #tpu.memory_space<vmem>>, %arg10: memref<32x1024xf32, #tpu.memory_space<vmem>>, %arg11: memref<32x1024xf32, #tpu.memory_space<vmem>>) attributes {dimension_semantics = [#tpu.dimension_semantics<parallel>, #tpu.dimension_semantics<arbitrary>], iteration_bounds = array<i64: 2, 2>, scalar_prefetch = 0 : i64, scratch_operands = 4 : i64, tpu.core_type = #tpu.core_type<tc>, window_params = [{transform_indices = @transform_0, window_bounds = array<i64: 1, 32, 128>}, {pipeline_mode = #tpu.pipeline_mode<synchronous>, transform_indices = @transform_1, window_bounds = array<i64: 128, 2176>}, {pipeline_mode = #tpu.pipeline_mode<synchronous>, transform_indices = @transform_2, window_bounds = array<i64: 1, 1024>}, {pipeline_mode = #tpu.pipeline_mode<synchronous>, transform_indices = @transform_3, window_bounds = array<i64: 1, 128>}, {pipeline_mode = #tpu.pipeline_mode<synchronous>, transform_indices = @transform_4, window_bounds = array<i64: 1, 128>}, {transform_indices = @transform_5, window_bounds = array<i64: 1, 32, 128>}]} {
    %c0 = arith.constant 0 : index
    %c0_0 = arith.constant 0 : index
    %c0_1 = arith.constant 0 : index
    %0 = vector.load %arg2[%c0, %c0_0, %c0_1] : memref<1x32x128xf32, #tpu.memory_space<vmem>>, vector<1x32x128xf32>
    %1 = vector.shape_cast %0 : vector<1x32x128xf32> to vector<32x128xf32>
    %2 = arith.truncf %1 : vector<32x128xf32> to vector<32x128xbf16>
    %c0_2 = arith.constant 0 : index
    %c0_3 = arith.constant 0 : index
    %3 = vector.load %arg3[%c0_2, %c0_3] : memref<128x2176xbf16, #tpu.memory_space<vmem>>, vector<128x2176xbf16>
    %cst = arith.constant dense<0.000000e+00> : vector<32x2176xf32>
    %4 = tpu.matmul %2, %3, %cst {dimension_numbers = #tpu.dot_dimension_numbers<[1], [0], [0], [1], [0, 0, 1, 1], [], []>} : vector<32x128xbf16>, vector<128x2176xbf16>, vector<32x2176xf32> -> vector<32x2176xf32>
    %5 = vector.extract_strided_slice %4 {offsets = [0, 0], sizes = [32, 128], strides = [1, 1]} : vector<32x2176xf32> to vector<32x128xf32>
    %c0_4 = arith.constant 0 : index
    %c0_5 = arith.constant 0 : index
    %6 = vector.load %arg6[%c0_4, %c0_5] : memref<1x128xf32, #tpu.memory_space<vmem>>, vector<1x128xf32>
    %7 = vector.broadcast %6 : vector<1x128xf32> to vector<32x128xf32>
    %8 = arith.addf %5, %7 : vector<32x128xf32>
    %cst_6 = arith.constant 0.000000e+00 : f32
    %9 = vector.broadcast %cst_6 : f32 to vector<32x128xf32>
    %10 = arith.maximumf %8, %9 : vector<32x128xf32>
    %11 = vector.broadcast %cst_6 : f32 to vector<32x128xf32>
    %12 = arith.subf %8, %11 : vector<32x128xf32>
    %13 = arith.cmpf one, %12, %12 : vector<32x128xf32>
    %14 = vector.broadcast %cst_6 : f32 to vector<32x128xf32>
    %15 = arith.addf %8, %14 : vector<32x128xf32>
    %16 = math.absf %12 : vector<32x128xf32>
    %cst_7 = arith.constant 0.000000e+00 : f32
    %17 = vector.broadcast %cst_7 : f32 to vector<32x128xf32>
    %18 = arith.subf %17, %16 : vector<32x128xf32>
    %19 = math.exp %18 : vector<32x128xf32>
    %20 = math.log1p %19 : vector<32x128xf32>
    %21 = arith.addf %10, %20 : vector<32x128xf32>
    %22 = arith.select %13, %15, %21 : vector<32x128xi1>, vector<32x128xf32>
    %23 = arith.mulf %22, %1 : vector<32x128xf32>
    %c0_8 = arith.constant 0 : index
    %c0_9 = arith.constant 0 : index
    %24 = vector.load %arg4[%c0_8, %c0_9] : memref<1x1024xf32, #tpu.memory_space<vmem>>, vector<1x128xf32>
    %25 = vector.broadcast %24 : vector<1x128xf32> to vector<32x128xf32>
    %26 = arith.mulf %22, %25 : vector<32x128xf32>
    %27 = math.exp %26 : vector<32x128xf32>
    %c0_10 = arith.constant 0 : index
    %c0_11 = arith.constant 0 : index
    %28 = vector.load %arg9[%c0_10, %c0_11] : memref<32x1024xf32, #tpu.memory_space<vmem>>, vector<32x128xf32>
    tpu.vector_store %arg9[%c0_10, %c0_11], %27 {strides = array<i32>} : memref<32x1024xf32, #tpu.memory_space<vmem>>, vector<32x128xf32>,
    %29 = vector.extract_strided_slice %4 {offsets = [0, 128], sizes = [32, 128], strides = [1, 1]} : vector<32x2176xf32> to vector<32x128xf32>
    %30 = arith.mulf %29, %23 : vector<32x128xf32>
    %c0_12 = arith.constant 0 : index
    %c0_13 = arith.constant 0 : index
    %31 = vector.load %arg10[%c0_12, %c0_13] : memref<32x1024xf32, #tpu.memory_space<vmem>>, vector<32x128xf32>
    tpu.vector_store %arg10[%c0_12, %c0_13], %30 {strides = array<i32>} : memref<32x1024xf32, #tpu.memory_space<vmem>>, vector<32x128xf32>,
    %c0_14 = arith.constant 0 : index
    %c128 = arith.constant 128 : index
    %32 = vector.load %arg4[%c0_14, %c128] : memref<1x1024xf32, #tpu.memory_space<vmem>>, vector<1x128xf32>
    %33 = vector.broadcast %32 : vector<1x128xf32> to vector<32x128xf32>
    %34 = arith.mulf %22, %33 : vector<32x128xf32>
    %35 = math.exp %34 : vector<32x128xf32>
    %c0_15 = arith.constant 0 : index
    %c128_16 = arith.constant 128 : index
    %36 = vector.load %arg9[%c0_15, %c128_16] : memref<32x1024xf32, #tpu.memory_space<vmem>>, vector<32x128xf32>
    tpu.vector_store %arg9[%c0_15, %c128_16], %35 {strides = array<i32>} : memref<32x1024xf32, #tpu.memory_space<vmem>>, vector<32x128xf32>,
    %37 = vector.extract_strided_slice %4 {offsets = [0, 256], sizes = [32, 128], strides = [1, 1]} : vector<32x2176xf32> to vector<32x128xf32>
    %38 = arith.mulf %37, %23 : vector<32x128xf32>
    %c0_17 = arith.constant 0 : index
    %c128_18 = arith.constant 128 : index
    %39 = vector.load %arg10[%c0_17, %c128_18] : memref<32x1024xf32, #tpu.memory_space<vmem>>, vector<32x128xf32>
    tpu.vector_store %arg10[%c0_17, %c128_18], %38 {strides = array<i32>} : memref<32x1024xf32, #tpu.memory_space<vmem>>, vector<32x128xf32>,
    %c0_19 = arith.constant 0 : index
    %c256 = arith.constant 256 : index
    %40 = vector.load %arg4[%c0_19, %c256] : memref<1x1024xf32, #tpu.memory_space<vmem>>, vector<1x128xf32>
    %41 = vector.broadcast %40 : vector<1x128xf32> to vector<32x128xf32>
    %42 = arith.mulf %22, %41 : vector<32x128xf32>
    %43 = math.exp %42 : vector<32x128xf32>
    %c0_20 = arith.constant 0 : index
    %c256_21 = arith.constant 256 : index
    %44 = vector.load %arg9[%c0_20, %c256_21] : memref<32x1024xf32, #tpu.memory_space<vmem>>, vector<32x128xf32>
    tpu.vector_store %arg9[%c0_20, %c256_21], %43 {strides = array<i32>} : memref<32x1024xf32, #tpu.memory_space<vmem>>, vector<32x128xf32>,
    %45 = vector.extract_strided_slice %4 {offsets = [0, 384], sizes = [32, 128], strides = [1, 1]} : vector<32x2176xf32> to vector<32x128xf32>
    %46 = arith.mulf %45, %23 : vector<32x128xf32>
    %c0_22 = arith.constant 0 : index
    %c256_23 = arith.constant 256 : index
    %47 = vector.load %arg10[%c0_22, %c256_23] : memref<32x1024xf32, #tpu.memory_space<vmem>>, vector<32x128xf32>
    tpu.vector_store %arg10[%c0_22, %c256_23], %46 {strides = array<i32>} : memref<32x1024xf32, #tpu.memory_space<vmem>>, vector<32x128xf32>,
    %c0_24 = arith.constant 0 : index
    %c384 = arith.constant 384 : index
    %48 = vector.load %arg4[%c0_24, %c384] : memref<1x1024xf32, #tpu.memory_space<vmem>>, vector<1x128xf32>
    %49 = vector.broadcast %48 : vector<1x128xf32> to vector<32x128xf32>
    %50 = arith.mulf %22, %49 : vector<32x128xf32>
    %51 = math.exp %50 : vector<32x128xf32>
    %c0_25 = arith.constant 0 : index
    %c384_26 = arith.constant 384 : index
    %52 = vector.load %arg9[%c0_25, %c384_26] : memref<32x1024xf32, #tpu.memory_space<vmem>>, vector<32x128xf32>
    tpu.vector_store %arg9[%c0_25, %c384_26], %51 {strides = array<i32>} : memref<32x1024xf32, #tpu.memory_space<vmem>>, vector<32x128xf32>,
    %53 = vector.extract_strided_slice %4 {offsets = [0, 512], sizes = [32, 128], strides = [1, 1]} : vector<32x2176xf32> to vector<32x128xf32>
    %54 = arith.mulf %53, %23 : vector<32x128xf32>
    %c0_27 = arith.constant 0 : index
    %c384_28 = arith.constant 384 : index
    %55 = vector.load %arg10[%c0_27, %c384_28] : memref<32x1024xf32, #tpu.memory_space<vmem>>, vector<32x128xf32>
    tpu.vector_store %arg10[%c0_27, %c384_28], %54 {strides = array<i32>} : memref<32x1024xf32, #tpu.memory_space<vmem>>, vector<32x128xf32>,
    %c0_29 = arith.constant 0 : index
    %c512 = arith.constant 512 : index
    %56 = vector.load %arg4[%c0_29, %c512] : memref<1x1024xf32, #tpu.memory_space<vmem>>, vector<1x128xf32>
    %57 = vector.broadcast %56 : vector<1x128xf32> to vector<32x128xf32>
    %58 = arith.mulf %22, %57 : vector<32x128xf32>
    %59 = math.exp %58 : vector<32x128xf32>
    %c0_30 = arith.constant 0 : index
    %c512_31 = arith.constant 512 : index
    %60 = vector.load %arg9[%c0_30, %c512_31] : memref<32x1024xf32, #tpu.memory_space<vmem>>, vector<32x128xf32>
    tpu.vector_store %arg9[%c0_30, %c512_31], %59 {strides = array<i32>} : memref<32x1024xf32, #tpu.memory_space<vmem>>, vector<32x128xf32>,
    %61 = vector.extract_strided_slice %4 {offsets = [0, 640], sizes = [32, 128], strides = [1, 1]} : vector<32x2176xf32> to vector<32x128xf32>
    %62 = arith.mulf %61, %23 : vector<32x128xf32>
    %c0_32 = arith.constant 0 : index
    %c512_33 = arith.constant 512 : index
    %63 = vector.load %arg10[%c0_32, %c512_33] : memref<32x1024xf32, #tpu.memory_space<vmem>>, vector<32x128xf32>
    tpu.vector_store %arg10[%c0_32, %c512_33], %62 {strides = array<i32>} : memref<32x1024xf32, #tpu.memory_space<vmem>>, vector<32x128xf32>,
    %c0_34 = arith.constant 0 : index
    %c640 = arith.constant 640 : index
    %64 = vector.load %arg4[%c0_34, %c640] : memref<1x1024xf32, #tpu.memory_space<vmem>>, vector<1x128xf32>
    %65 = vector.broadcast %64 : vector<1x128xf32> to vector<32x128xf32>
    %66 = arith.mulf %22, %65 : vector<32x128xf32>
    %67 = math.exp %66 : vector<32x128xf32>
    %c0_35 = arith.constant 0 : index
    %c640_36 = arith.constant 640 : index
    %68 = vector.load %arg9[%c0_35, %c640_36] : memref<32x1024xf32, #tpu.memory_space<vmem>>, vector<32x128xf32>
    tpu.vector_store %arg9[%c0_35, %c640_36], %67 {strides = array<i32>} : memref<32x1024xf32, #tpu.memory_space<vmem>>, vector<32x128xf32>,
    %69 = vector.extract_strided_slice %4 {offsets = [0, 768], sizes = [32, 128], strides = [1, 1]} : vector<32x2176xf32> to vector<32x128xf32>
    %70 = arith.mulf %69, %23 : vector<32x128xf32>
    %c0_37 = arith.constant 0 : index
    %c640_38 = arith.constant 640 : index
    %71 = vector.load %arg10[%c0_37, %c640_38] : memref<32x1024xf32, #tpu.memory_space<vmem>>, vector<32x128xf32>
    tpu.vector_store %arg10[%c0_37, %c640_38], %70 {strides = array<i32>} : memref<32x1024xf32, #tpu.memory_space<vmem>>, vector<32x128xf32>,
    %c0_39 = arith.constant 0 : index
    %c768 = arith.constant 768 : index
    %72 = vector.load %arg4[%c0_39, %c768] : memref<1x1024xf32, #tpu.memory_space<vmem>>, vector<1x128xf32>
    %73 = vector.broadcast %72 : vector<1x128xf32> to vector<32x128xf32>
    %74 = arith.mulf %22, %73 : vector<32x128xf32>
    %75 = math.exp %74 : vector<32x128xf32>
    %c0_40 = arith.constant 0 : index
    %c768_41 = arith.constant 768 : index
    %76 = vector.load %arg9[%c0_40, %c768_41] : memref<32x1024xf32, #tpu.memory_space<vmem>>, vector<32x128xf32>
    tpu.vector_store %arg9[%c0_40, %c768_41], %75 {strides = array<i32>} : memref<32x1024xf32, #tpu.memory_space<vmem>>, vector<32x128xf32>,
    %77 = vector.extract_strided_slice %4 {offsets = [0, 896], sizes = [32, 128], strides = [1, 1]} : vector<32x2176xf32> to vector<32x128xf32>
    %78 = arith.mulf %77, %23 : vector<32x128xf32>
    %c0_42 = arith.constant 0 : index
    %c768_43 = arith.constant 768 : index
    %79 = vector.load %arg10[%c0_42, %c768_43] : memref<32x1024xf32, #tpu.memory_space<vmem>>, vector<32x128xf32>
    tpu.vector_store %arg10[%c0_42, %c768_43], %78 {strides = array<i32>} : memref<32x1024xf32, #tpu.memory_space<vmem>>, vector<32x128xf32>,
    %c0_44 = arith.constant 0 : index
    %c896 = arith.constant 896 : index
    %80 = vector.load %arg4[%c0_44, %c896] : memref<1x1024xf32, #tpu.memory_space<vmem>>, vector<1x128xf32>
    %81 = vector.broadcast %80 : vector<1x128xf32> to vector<32x128xf32>
    %82 = arith.mulf %22, %81 : vector<32x128xf32>
    %83 = math.exp %82 : vector<32x128xf32>
    %c0_45 = arith.constant 0 : index
    %c896_46 = arith.constant 896 : index
    %84 = vector.load %arg9[%c0_45, %c896_46] : memref<32x1024xf32, #tpu.memory_space<vmem>>, vector<32x128xf32>
    tpu.vector_store %arg9[%c0_45, %c896_46], %83 {strides = array<i32>} : memref<32x1024xf32, #tpu.memory_space<vmem>>, vector<32x128xf32>,
    %85 = vector.extract_strided_slice %4 {offsets = [0, 1024], sizes = [32, 128], strides = [1, 1]} : vector<32x2176xf32> to vector<32x128xf32>
    %86 = arith.mulf %85, %23 : vector<32x128xf32>
    %c0_47 = arith.constant 0 : index
    %c896_48 = arith.constant 896 : index
    %87 = vector.load %arg10[%c0_47, %c896_48] : memref<32x1024xf32, #tpu.memory_space<vmem>>, vector<32x128xf32>
    tpu.vector_store %arg10[%c0_47, %c896_48], %86 {strides = array<i32>} : memref<32x1024xf32, #tpu.memory_space<vmem>>, vector<32x128xf32>,
    %88 = vector.extract_strided_slice %4 {offsets = [0, 1152], sizes = [32, 1024], strides = [1, 1]} : vector<32x2176xf32> to vector<32x1024xf32>
    %c0_49 = arith.constant 0 : index
    %c0_50 = arith.constant 0 : index
    %89 = vector.load %arg11[%c0_49, %c0_50] : memref<32x1024xf32, #tpu.memory_space<vmem>>, vector<32x1024xf32>
    tpu.vector_store %arg11[%c0_49, %c0_50], %88 {strides = array<i32>} : memref<32x1024xf32, #tpu.memory_space<vmem>>, vector<32x1024xf32>,
    %c0_i32 = arith.constant 0 : i32
    %90 = arith.cmpi eq, %arg1, %c0_i32 : i32
    %91 = arith.extui %90 : i1 to i32
    %c0_i32_51 = arith.constant 0 : i32
    %92 = arith.cmpi ne, %91, %c0_i32_51 : i32
    scf.if %92 {
      %cst_60 = arith.constant 0.000000e+00 : f32
      %100 = vector.broadcast %cst_60 : f32 to vector<1x1024xf32>
      %c0_61 = arith.constant 0 : index
      %c0_62 = arith.constant 0 : index
      %101 = vector.load %arg8[%c0_61, %c0_62] : memref<1x1024xf32, #tpu.memory_space<vmem>>, vector<1x1024xf32>
      tpu.vector_store %arg8[%c0_61, %c0_62], %100 {strides = array<i32>} : memref<1x1024xf32, #tpu.memory_space<vmem>>, vector<1x1024xf32>,
    } else {
    }
    %c0_52 = arith.constant 0 : index
    %c0_53 = arith.constant 0 : index
    %93 = vector.load %arg5[%c0_52, %c0_53] : memref<1x128xf32, #tpu.memory_space<vmem>>, vector<1x128xf32>
    %94 = vector.shape_cast %93 : vector<1x128xf32> to vector<1x128xf32>
    %95 = vector.broadcast %94 : vector<1x128xf32> to vector<8x128xf32>
    %c0_54 = arith.constant 0 : index
    %c0_55 = arith.constant 0 : index
    %96 = vector.load %arg8[%c0_54, %c0_55] : memref<1x1024xf32, #tpu.memory_space<vmem>>, vector<1x1024xf32>
    %c0_i32_56 = arith.constant 0 : i32
    %c4_i32 = arith.constant 4 : i32
    %97 = arith.addi %c0_i32_56, %c4_i32 : i32
    %c1_i32 = arith.constant 1 : i32
    %98 = scf.for %arg12 = %c0_i32_56 to %97 step %c1_i32 iter_args(%arg13 = %96) -> (vector<1x1024xf32>)  : i32 {
      %c8_i32 = arith.constant 8 : i32
      %100 = arith.muli %arg12, %c8_i32 : i32
      %101 = tpu.assume_multiple %100, 8 : i32
      %102 = arith.index_cast %101 : i32 to index
      %c0_60 = arith.constant 0 : index
      %103 = vector.load %arg9[%102, %c0_60] : memref<32x1024xf32, #tpu.memory_space<vmem>>, vector<8x1024xf32>
      %104 = arith.index_cast %101 : i32 to index
      %c0_61 = arith.constant 0 : index
      %105 = vector.load %arg10[%104, %c0_61] : memref<32x1024xf32, #tpu.memory_space<vmem>>, vector<8x1024xf32>
      %cst_62 = arith.constant 1.000000e+00 : f32
      %106 = vector.broadcast %cst_62 : f32 to vector<1x1024xf32>
      %107 = vector.extract_strided_slice %103 {offsets = [0, 0], sizes = [7, 1024], strides = [1, 1]} : vector<8x1024xf32> to vector<7x1024xf32>
      %108 = tpu.concatenate %106, %107 in 0 : vector<1x1024xf32>, vector<7x1024xf32> -> vector<8x1024xf32>
      %cst_63 = arith.constant 0.000000e+00 : f32
      %109 = vector.broadcast %cst_63 : f32 to vector<1x1024xf32>
      %110 = vector.extract_strided_slice %105 {offsets = [0, 0], sizes = [7, 1024], strides = [1, 1]} : vector<8x1024xf32> to vector<7x1024xf32>
      %111 = tpu.concatenate %109, %110 in 0 : vector<1x1024xf32>, vector<7x1024xf32> -> vector<8x1024xf32>
      %112 = arith.mulf %103, %111 : vector<8x1024xf32>
      %113 = arith.addf %112, %105 : vector<8x1024xf32>
      %114 = arith.mulf %103, %108 : vector<8x1024xf32>
      %cst_64 = arith.constant 1.000000e+00 : f32
      %115 = vector.broadcast %cst_64 : f32 to vector<2x1024xf32>
      %116 = vector.extract_strided_slice %114 {offsets = [0, 0], sizes = [6, 1024], strides = [1, 1]} : vector<8x1024xf32> to vector<6x1024xf32>
      %117 = tpu.concatenate %115, %116 in 0 : vector<2x1024xf32>, vector<6x1024xf32> -> vector<8x1024xf32>
      %cst_65 = arith.constant 0.000000e+00 : f32
      %118 = vector.broadcast %cst_65 : f32 to vector<2x1024xf32>
      %119 = vector.extract_strided_slice %113 {offsets = [0, 0], sizes = [6, 1024], strides = [1, 1]} : vector<8x1024xf32> to vector<6x1024xf32>
      %120 = tpu.concatenate %118, %119 in 0 : vector<2x1024xf32>, vector<6x1024xf32> -> vector<8x1024xf32>
      %121 = arith.mulf %114, %120 : vector<8x1024xf32>
      %122 = arith.addf %121, %113 : vector<8x1024xf32>
      %123 = arith.mulf %114, %117 : vector<8x1024xf32>
      %cst_66 = arith.constant 1.000000e+00 : f32
      %124 = vector.broadcast %cst_66 : f32 to vector<4x1024xf32>
      %125 = vector.extract_strided_slice %123 {offsets = [0, 0], sizes = [4, 1024], strides = [1, 1]} : vector<8x1024xf32> to vector<4x1024xf32>
      %126 = tpu.concatenate %124, %125 in 0 : vector<4x1024xf32>, vector<4x1024xf32> -> vector<8x1024xf32>
      %cst_67 = arith.constant 0.000000e+00 : f32
      %127 = vector.broadcast %cst_67 : f32 to vector<4x1024xf32>
      %128 = vector.extract_strided_slice %122 {offsets = [0, 0], sizes = [4, 1024], strides = [1, 1]} : vector<8x1024xf32> to vector<4x1024xf32>
      %129 = tpu.concatenate %127, %128 in 0 : vector<4x1024xf32>, vector<4x1024xf32> -> vector<8x1024xf32>
      %130 = arith.mulf %123, %129 : vector<8x1024xf32>
      %131 = arith.addf %130, %122 : vector<8x1024xf32>
      %132 = arith.mulf %123, %126 : vector<8x1024xf32>
      %133 = vector.shape_cast %arg13 : vector<1x1024xf32> to vector<1x1024xf32>
      %134 = vector.broadcast %133 : vector<1x1024xf32> to vector<8x1024xf32>
      %135 = arith.mulf %132, %134 : vector<8x1024xf32>
      %136 = arith.addf %135, %131 : vector<8x1024xf32>
      %137 = arith.index_cast %101 : i32 to index
      %c0_68 = arith.constant 0 : index
      %138 = vector.load %arg11[%137, %c0_68] : memref<32x1024xf32, #tpu.memory_space<vmem>>, vector<8x1024xf32>
      %139 = arith.mulf %136, %138 : vector<8x1024xf32>
      %140 = vector.extract_strided_slice %139 {offsets = [0, 0], sizes = [8, 128], strides = [1, 1]} : vector<8x1024xf32> to vector<8x128xf32>
      %141 = vector.extract_strided_slice %139 {offsets = [0, 128], sizes = [8, 128], strides = [1, 1]} : vector<8x1024xf32> to vector<8x128xf32>
      %142 = arith.addf %140, %141 : vector<8x128xf32>
      %143 = vector.extract_strided_slice %139 {offsets = [0, 256], sizes = [8, 128], strides = [1, 1]} : vector<8x1024xf32> to vector<8x128xf32>
      %144 = arith.addf %142, %143 : vector<8x128xf32>
      %145 = vector.extract_strided_slice %139 {offsets = [0, 384], sizes = [8, 128], strides = [1, 1]} : vector<8x1024xf32> to vector<8x128xf32>
      %146 = arith.addf %144, %145 : vector<8x128xf32>
      %147 = vector.extract_strided_slice %139 {offsets = [0, 512], sizes = [8, 128], strides = [1, 1]} : vector<8x1024xf32> to vector<8x128xf32>
      %148 = arith.addf %146, %147 : vector<8x128xf32>
      %149 = vector.extract_strided_slice %139 {offsets = [0, 640], sizes = [8, 128], strides = [1, 1]} : vector<8x1024xf32> to vector<8x128xf32>
      %150 = arith.addf %148, %149 : vector<8x128xf32>
      %151 = vector.extract_strided_slice %139 {offsets = [0, 768], sizes = [8, 128], strides = [1, 1]} : vector<8x1024xf32> to vector<8x128xf32>
      %152 = arith.addf %150, %151 : vector<8x128xf32>
      %153 = vector.extract_strided_slice %139 {offsets = [0, 896], sizes = [8, 128], strides = [1, 1]} : vector<8x1024xf32> to vector<8x128xf32>
      %154 = arith.addf %152, %153 : vector<8x128xf32>
      %c0_69 = arith.constant 0 : index
      %155 = arith.index_cast %101 : i32 to index
      %c0_70 = arith.constant 0 : index
      %156 = vector.load %arg2[%c0_69, %155, %c0_70] : memref<1x32x128xf32, #tpu.memory_space<vmem>>, vector<1x8x128xf32>
      %157 = vector.shape_cast %156 : vector<1x8x128xf32> to vector<8x128xf32>
      %158 = arith.mulf %157, %95 : vector<8x128xf32>
      %159 = arith.addf %154, %158 : vector<8x128xf32>
      %c0_71 = arith.constant 0 : index
      %160 = arith.index_cast %101 : i32 to index
      %c0_72 = arith.constant 0 : index
      %161 = vector.load %arg7[%c0_71, %160, %c0_72] : memref<1x32x128xf32, #tpu.memory_space<vmem>>, vector<1x8x128xf32>
      %162 = vector.shape_cast %161 : vector<1x8x128xf32> to vector<8x128xf32>
      %163 = vector.shape_cast %159 : vector<8x128xf32> to vector<1x8x128xf32>
      tpu.vector_store %arg7[%c0_71, %160, %c0_72], %163 {strides = array<i32>} : memref<1x32x128xf32, #tpu.memory_space<vmem>>, vector<1x8x128xf32>,
      %164 = vector.extract_strided_slice %136 {offsets = [7, 0], sizes = [1, 1024], strides = [1, 1]} : vector<8x1024xf32> to vector<1x1024xf32>
      scf.yield %164 : vector<1x1024xf32>
    }
    %c4_i32_57 = arith.constant 4 : i32
    %c0_58 = arith.constant 0 : index
    %c0_59 = arith.constant 0 : index
    %99 = vector.load %arg8[%c0_58, %c0_59] : memref<1x1024xf32, #tpu.memory_space<vmem>>, vector<1x1024xf32>
    tpu.vector_store %arg8[%c0_58, %c0_59], %98 {strides = array<i32>} : memref<1x1024xf32, #tpu.memory_space<vmem>>, vector<1x1024xf32>,
    return
  }
  func.func @transform_0(%arg0: i32, %arg1: i32) -> (i32, i32, i32) {
    %c0_i32 = arith.constant 0 : i32
    %c0_i32_0 = arith.constant 0 : i32
    return %arg0, %arg1, %c0_i32 : i32, i32, i32
  }
  func.func @transform_1(%arg0: i32, %arg1: i32) -> (i32, i32) {
    %c0_i32 = arith.constant 0 : i32
    %c0_i32_0 = arith.constant 0 : i32
    %c0_i32_1 = arith.constant 0 : i32
    return %c0_i32, %c0_i32_0 : i32, i32
  }
  func.func @transform_2(%arg0: i32, %arg1: i32) -> (i32, i32) {
    %c0_i32 = arith.constant 0 : i32
    %c0_i32_0 = arith.constant 0 : i32
    %c0_i32_1 = arith.constant 0 : i32
    return %c0_i32, %c0_i32_0 : i32, i32
  }
  func.func @transform_3(%arg0: i32, %arg1: i32) -> (i32, i32) {
    %c0_i32 = arith.constant 0 : i32
    %c0_i32_0 = arith.constant 0 : i32
    %c0_i32_1 = arith.constant 0 : i32
    return %c0_i32, %c0_i32_0 : i32, i32
  }
  func.func @transform_4(%arg0: i32, %arg1: i32) -> (i32, i32) {
    %c0_i32 = arith.constant 0 : i32
    %c0_i32_0 = arith.constant 0 : i32
    %c0_i32_1 = arith.constant 0 : i32
    return %c0_i32, %c0_i32_0 : i32, i32
  }
  func.func @transform_5(%arg0: i32, %arg1: i32) -> (i32, i32, i32) {
    %c0_i32 = arith.constant 0 : i32
    %c0_i32_0 = arith.constant 0 : i32
    return %arg0, %arg1, %c0_i32 : i32, i32, i32
  }
}

</mosaic_0001>

<llo_original>
// kernel: ss2d_forward.1
$region0: #{ss2d_forward.1}
  #allocation0 [shape = 'u32[]', space=smem, size = 0x4, offset = 0x4, fixed_abs, tag = 'smem constant byte address 0x4 - core index']
  #allocation1 [shape = 'u32[72,128]{1,0:T(1,128)}', space=vmem, size = 0x9000, scoped, tag = 'internal scratch']
  #allocation2 [shape = 'f32[1,1024]{1,0:T(1,128)}', space=vmem, size = 0x1000, scoped, tag = 'scratch operand']
  #allocation3 [shape = 'f32[32,1024]{1,0:T(8,128)}', space=vmem, size = 0x20000, scoped, tag = 'scratch operand']
  #allocation4 [shape = 'f32[32,1024]{1,0:T(8,128)}', space=vmem, size = 0x20000, scoped, tag = 'scratch operand']
  #allocation5 [shape = 'f32[32,1024]{1,0:T(8,128)}', space=vmem, size = 0x20000, scoped, tag = 'scratch operand']
  %s0 = inlined_call_operand.vmem [shape: f32[2,64,128], index: 0, kind: input, shape index: {}]
  %s1 = inlined_call_operand.vmem [shape: bf16[128,2176], index: 1, kind: input, shape index: {}]
  %s2 = inlined_call_operand.vmem [shape: f32[1,1024], index: 2, kind: input, shape index: {}]
  %s3 = inlined_call_operand.vmem [shape: f32[1,128], index: 3, kind: input, shape index: {}]
  %s4 = inlined_call_operand.vmem [shape: f32[1,128], index: 4, kind: input, shape index: {}]
  %s5 = inlined_call_operand.vmem [shape: f32[2,64,128], index: 5, kind: output, shape index: {}]
  %s6 = sld [smem:[#allocation0]]
  $region64: #{ss2d_forward.1} parent=0
    _
  %s8 = ssub.s32 1, %s6
  %s9 = scalar_select 0, %s8, %s6
  loop: start=0, step=1, limit=6
  $region2: #{ss2d_forward.1} parent=0 // loop_pre_header
    _
  $region3: #{ss2d_forward.1} parent=0 // loop_header
    %s11 = sphi 0, %s15
    %p12 = scmp.ge.s32.totalorder %s11, 6
    %s18 = sphi 0, %s30
    %s19 = sphi 0, %s26
    %s20 = sphi 0, %s18
    %s21 = sphi 0, %s19
    %s22 = sphi 0, %s20
    %s23 = sphi 0, %s21
    %s35 = sphi 0, %s37
    %s38 = sphi 0, %s35
    %s39 = sphi 0, %s38
    %s55 = sphi 0, %s39
    %s59 = sphi 0, %s59
    %s61 = sphi 0, %s59
    %s62 = sphi 0, %s61
    %s76 = sphi 0, %s62
    %s80 = sphi 0, %s80
    %s82 = sphi 0, %s80
    %s83 = sphi 0, %s82
    %s97 = sphi 0, %s83
    %s101 = sphi 0, %s101
    %s103 = sphi 0, %s101
    %s104 = sphi 0, %s103
    %s118 = sphi 0, %s104
    %s122 = sphi 0, %s122
    %s124 = sphi 0, %s122
    %s125 = sphi 0, %s124
    %s139 = sphi 0, %s125
    %s147 = sphi 0, %s149
    %s150 = sphi 0, %s147
    %s151 = sphi 0, %s150
    %s167 = sphi 0, %s151
  $region4: #{ss2d_forward.1} parent=0 // loop_header_branch
    %14 = sbr.rel (%p12) target = $region8
  $region5: #{ss2d_forward.1} parent=0 // loop_body
    %s16 = ssub.s32 %s11, 1
    %s17 = ssub.s32 %s11, 2
    %s24 = sadd.s32 1, %s19
    %p25 = scmp.ge.s32.totalorder %s24, 2
    %s26 = scalar_select %p25, 0, %s24
    %s27 = sadd.s32 1, %s18
    %s28 = scalar_select %p25, %s27, %s18
    %p29 = scmp.ge.s32.totalorder %s28, 2
    %s30 = scalar_select %p29, 0, %s28
    %s31 = ssub.s32 %s18, %s30
    %s32 = ssub.s32 %s19, %s26
    %s33 = sor.u32 %s31, %s32
    %p34 = scmp.eq.s32.totalorder %s33, 0
    %s36 = sadd.s32 %s35, 1
    %s37 = scalar_select %p34, %s35, %s36
    %p40 = pneg %p34
    %p41 = scmp.eq.s32.totalorder %s11, 3
    %p42 = por %p40, %p41
    %p43 = scmp.ne.s32.totalorder %s35, %s38
    %p44 = scmp.eq.s32.totalorder %s11, 0
    %p45 = por %p43, %p44
    %p46 = scmp.ne.s32.totalorder %s35, %s38
    %p47 = scmp.eq.s32.totalorder %s16, 3
    %p48 = por %p46, %p47
    %p49 = scmp.ne.s32.totalorder %s38, %s39
    %p50 = scmp.eq.s32.totalorder %s16, 0
    %p51 = por %p49, %p50
    %p52 = scmp.ne.s32.totalorder %s38, %s39
    %p53 = scmp.eq.s32.totalorder %s17, 3
    %p54 = por %p52, %p53
    %p56 = scmp.ne.s32.totalorder %s39, %s55
    %p57 = scmp.eq.s32.totalorder %s17, 0
    %p58 = por %p56, %p57
    %s60 = sadd.s32 %s59, 1
    %p63 = scmp.eq.s32.totalorder %s11, 3
    %p64 = scmp.ne.s32.totalorder %s59, %s61
    %p65 = scmp.eq.s32.totalorder %s11, 0
    %p66 = por %p64, %p65
    %p67 = scmp.ne.s32.totalorder %s59, %s61
    %p68 = scmp.eq.s32.totalorder %s16, 3
    %p69 = por %p67, %p68
    %p70 = scmp.ne.s32.totalorder %s61, %s62
    %p71 = scmp.eq.s32.totalorder %s16, 0
    %p72 = por %p70, %p71
    %p73 = scmp.ne.s32.totalorder %s61, %s62
    %p74 = scmp.eq.s32.totalorder %s17, 3
    %p75 = por %p73, %p74
    %p77 = scmp.ne.s32.totalorder %s62, %s76
    %p78 = scmp.eq.s32.totalorder %s17, 0
    %p79 = por %p77, %p78
    %s81 = sadd.s32 %s80, 1
    %p84 = scmp.eq.s32.totalorder %s11, 3
    %p85 = scmp.ne.s32.totalorder %s80, %s82
    %p86 = scmp.eq.s32.totalorder %s11, 0
    %p87 = por %p85, %p86
    %p88 = scmp.ne.s32.totalorder %s80, %s82
    %p89 = scmp.eq.s32.totalorder %s16, 3
    %p90 = por %p88, %p89
    %p91 = scmp.ne.s32.totalorder %s82, %s83
    %p92 = scmp.eq.s32.totalorder %s16, 0
    %p93 = por %p91, %p92
    %p94 = scmp.ne.s32.totalorder %s82, %s83
    %p95 = scmp.eq.s32.totalorder %s17, 3
    %p96 = por %p94, %p95
    %p98 = scmp.ne.s32.totalorder %s83, %s97
    %p99 = scmp.eq.s32.totalorder %s17, 0
    %p100 = por %p98, %p99
    %s102 = sadd.s32 %s101, 1
    %p105 = scmp.eq.s32.totalorder %s11, 3
    %p106 = scmp.ne.s32.totalorder %s101, %s103
    %p107 = scmp.eq.s32.totalorder %s11, 0
    %p108 = por %p106, %p107
    %p109 = scmp.ne.s32.totalorder %s101, %s103
    %p110 = scmp.eq.s32.totalorder %s16, 3
    %p111 = por %p109, %p110
    %p112 = scmp.ne.s32.totalorder %s103, %s104
    %p113 = scmp.eq.s32.totalorder %s16, 0
    %p114 = por %p112, %p113
    %p115 = scmp.ne.s32.totalorder %s103, %s104
    %p116 = scmp.eq.s32.totalorder %s17, 3
    %p117 = por %p115, %p116
    %p119 = scmp.ne.s32.totalorder %s104, %s118
    %p120 = scmp.eq.s32.totalorder %s17, 0
    %p121 = por %p119, %p120
    %s123 = sadd.s32 %s122, 1
    %p126 = scmp.eq.s32.totalorder %s11, 3
    %p127 = scmp.ne.s32.totalorder %s122, %s124
    %p128 = scmp.eq.s32.totalorder %s11, 0
    %p129 = por %p127, %p128
    %p130 = scmp.ne.s32.totalorder %s122, %s124
    %p131 = scmp.eq.s32.totalorder %s16, 3
    %p132 = por %p130, %p131
    %p133 = scmp.ne.s32.totalorder %s124, %s125
    %p134 = scmp.eq.s32.totalorder %s16, 0
    %p135 = por %p133, %p134
    %p136 = scmp.ne.s32.totalorder %s124, %s125
    %p137 = scmp.eq.s32.totalorder %s17, 3
    %p138 = por %p136, %p137
    %p140 = scmp.ne.s32.totalorder %s125, %s139
    %p141 = scmp.eq.s32.totalorder %s17, 0
    %p142 = por %p140, %p141
    %s143 = ssub.s32 %s18, %s30
    %s144 = ssub.s32 %s19, %s26
    %s145 = sor.u32 %s143, %s144
    %p146 = scmp.eq.s32.totalorder %s145, 0
    %s148 = sadd.s32 %s147, 1
    %s149 = scalar_select %p146, %s147, %s148
    %p152 = pneg %p146
    %p153 = scmp.eq.s32.totalorder %s11, 3
    %p154 = por %p152, %p153
    %p155 = scmp.ne.s32.totalorder %s147, %s150
    %p156 = scmp.eq.s32.totalorder %s11, 0
    %p157 = por %p155, %p156
    %p158 = scmp.ne.s32.totalorder %s147, %s150
    %p159 = scmp.eq.s32.totalorder %s16, 3
    %p160 = por %p158, %p159
    %p161 = scmp.ne.s32.totalorder %s150, %s151
    %p162 = scmp.eq.s32.totalorder %s16, 0
    %p163 = por %p161, %p162
    %p164 = scmp.ne.s32.totalorder %s150, %s151
    %p165 = scmp.eq.s32.totalorder %s17, 3
    %p166 = por %p164, %p165
    %p168 = scmp.ne.s32.totalorder %s151, %s167
    %p169 = scmp.eq.s32.totalorder %s17, 0
    %p170 = por %p168, %p169
    %p171 = scmp.le.s32.totalorder 1, %s11
    %p172 = scmp.lt.s32.totalorder %s11, 5
    %p173 = pnand %p171, %p172
    %p174 = pneg %p173
    // Predicated region
    $region9: #{ss2d_forward.1} parent=5 // pred_check
      _
    $region10: #{ss2d_forward.1} parent=5 // pred_check_branch
      %176 = sbr.rel (%p173) target = $region12
    $region11: #{ss2d_forward.1} parent=5 // pred_region
      %s177 = ssub.s32 %s11, 1
      // Predicated region
      $region13: #{ss2d_forward.1} parent=11 // pred_check
        %p178 = pneg %p72
      $region14: #{ss2d_forward.1} parent=11 // pred_check_branch
        %180 = sbr.rel (%p178) target = $region16
      $region15: #{ss2d_forward.1} parent=11 // pred_region
        _
      $region16: #{ss2d_forward.1} parent=11 // pred_fallthru
        _
      // Predicated region
      $region17: #{ss2d_forward.1} parent=11 // pred_check
        %p181 = pneg %p93
      $region18: #{ss2d_forward.1} parent=11 // pred_check_branch
        %183 = sbr.rel (%p181) target = $region20
      $region19: #{ss2d_forward.1} parent=11 // pred_region
        _
      $region20: #{ss2d_forward.1} parent=11 // pred_fallthru
        _
      // Predicated region
      $region21: #{ss2d_forward.1} parent=11 // pred_check
        %p184 = pneg %p114
      $region22: #{ss2d_forward.1} parent=11 // pred_check_branch
        %186 = sbr.rel (%p184) target = $region24
      $region23: #{ss2d_forward.1} parent=11 // pred_region
        _
      $region24: #{ss2d_forward.1} parent=11 // pred_fallthru
        _
      // Predicated region
      $region25: #{ss2d_forward.1} parent=11 // pred_check
        %p187 = pneg %p135
      $region26: #{ss2d_forward.1} parent=11 // pred_check_branch
        %189 = sbr.rel (%p187) target = $region28
      $region27: #{ss2d_forward.1} parent=11 // pred_region
        _
      $region28: #{ss2d_forward.1} parent=11 // pred_fallthru
        _
    $region12: #{ss2d_forward.1} parent=5 // pred_fallthru
      _
    %p190 = scmp.lt.s32.totalorder %s11, 4
    // Predicated region
    $region29: #{ss2d_forward.1} parent=5 // pred_check
      %p191 = pneg %p190
    $region30: #{ss2d_forward.1} parent=5 // pred_check_branch
      %193 = sbr.rel (%p191) target = $region32
    $region31: #{ss2d_forward.1} parent=5 // pred_region
      // Predicated region
      $region33: #{ss2d_forward.1} parent=31 // pred_check
        %p194 = pneg %p45
      $region34: #{ss2d_forward.1} parent=31 // pred_check_branch
        %196 = sbr.rel (%p194) target = $region36
      $region35: #{ss2d_forward.1} parent=31 // pred_region
        %s197 = smul.u32 4, %s19
        %p198 = scmp.lt.s32.totalorder %s18, 1
        %s199 = scalar_select %p198, %s18, 1
        %p200 = scmp.lt.s32.totalorder %s197, 7
        %s201 = scalar_select %p200, %s197, 7
        %s202 = smul.addr %s199, 8
        %s203 = sadd.s32 %s201, %s202
        %s204 = smul.addr %s203, 8
        %s205 = scalar_lea.vmem %s0, %s204
        %s206 = smul.u32 4, %s19
      $region36: #{ss2d_forward.1} parent=31 // pred_fallthru
        _
    $region32: #{ss2d_forward.1} parent=5 // pred_fallthru
      _
    %p207 = scmp.le.s32.totalorder 1, %s11
    %p208 = scmp.lt.s32.totalorder %s11, 5
    %p209 = pnand %p207, %p208
    %p210 = pneg %p209
    // Predicated region
    $region37: #{ss2d_forward.1} parent=5 // pred_check
      _
    $region38: #{ss2d_forward.1} parent=5 // pred_check_branch
      %212 = sbr.rel (%p209) target = $region40
    $region39: #{ss2d_forward.1} parent=5 // pred_region
      %s213 = ssub.s32 %s11, 1
      %s214 = smul.u32 4, %s21
      %p215 = scmp.lt.s32.totalorder %s20, 1
      %s216 = scalar_select %p215, %s20, 1
      %p217 = scmp.lt.s32.totalorder %s214, 7
      %s218 = scalar_select %p217, %s214, 7
      %s219 = smul.addr %s216, 8
      %s220 = sadd.s32 %s218, %s219
      %s221 = smul.addr %s220, 8
      %s222 = scalar_lea.vmem %s0, %s221
      %p223 = pneg %p51
      %p224 = pneg %p48
      %p225 = pneg %p72
      %p226 = pneg %p69
      %p227 = pneg %p93
      %p228 = pneg %p90
      %p229 = pneg %p114
      %p230 = pneg %p111
      %p231 = pneg %p135
      %p232 = pneg %p132
      %p233 = pneg %p163
      %p234 = pneg %p160
      %s235 = smul.u32 4, %s21
      %p236 = scmp.lt.s32.totalorder %s20, 1
      %s237 = scalar_select %p236, %s20, 1
      %p238 = scmp.lt.s32.totalorder %s235, 7
      %s239 = scalar_select %p238, %s235, 7
      %s240 = smul.addr %s237, 8
      %s241 = sadd.s32 %s239, %s240
      %s242 = smul.addr %s241, 8
      %s243 = scalar_lea.vmem %s5, %s242
      %s244 = smul.u32 4, %s21
      %p245 = scmp.lt.s32.totalorder %s20, 1
      %s246 = scalar_select %p245, %s20, 1
      %p247 = scmp.lt.s32.totalorder %s244, 7
      %s248 = scalar_select %p247, %s244, 7
      %s249 = smul.addr %s246, 8
      %s250 = sadd.s32 %s248, %s249
      %s251 = smul.addr %s250, 8
      %s252 = scalar_lea.vmem %s0, %s251
      %s253 = smul.u32 4, %s21
      %s254 = smul.u32 4, %s21
      %p255 = scmp.lt.s32.totalorder %s20, 1
      %s256 = scalar_select %p255, %s20, 1
      %p257 = scmp.lt.s32.totalorder %s254, 7
      %s258 = scalar_select %p257, %s254, 7
      %s259 = smul.addr %s256, 8
      %s260 = sadd.s32 %s258, %s259
      %s261 = smul.addr %s260, 8
      %s262 = scalar_lea.vmem %s5, %s261
      %s263 = smul.u32 4, %s21
      %v264 = vld [vmem:[%s252] sm:$0xff]
      %v265 = vld [vmem:[%s252 + $0x8] sm:$0xff]
      %v266 = vld [vmem:[%s252 + $0x10] sm:$0xff]
      %v267 = vld [vmem:[%s252 + $0x18] sm:$0xff]
      %v268 = vpack.c.bf16 %v265, %v264
      %v269 = vpack.c.bf16 %v267, %v266
      %v270 = vld [vmem:[%s1] sm:$0xff]
      %v271 = vld [vmem:[%s1 + $0x8] sm:$0xff]
      %v272 = vld [vmem:[%s1 + $0x10] sm:$0xff]
      %v273 = vld [vmem:[%s1 + $0x18] sm:$0xff]
      %v274 = vld [vmem:[%s1 + $0x20] sm:$0xff]
      %v275 = vld [vmem:[%s1 + $0x28] sm:$0xff]
      %v276 = vld [vmem:[%s1 + $0x30] sm:$0xff]
      %v277 = vld [vmem:[%s1 + $0x38] sm:$0xff]
      %v278 = vld [vmem:[%s1 + $0x40] sm:$0xf]
      %v279 = vld [vmem:[%s1 + $0x44] sm:$0xff]
      %v280 = vld [vmem:[%s1 + $0x4c] sm:$0xff]
      %v281 = vld [vmem:[%s1 + $0x54] sm:$0xff]
      %v282 = vld [vmem:[%s1 + $0x5c] sm:$0xff]
      %v283 = vld [vmem:[%s1 + $0x64] sm:$0xff]
      %v284 = vld [vmem:[%s1 + $0x6c] sm:$0xff]
      %v285 = vld [vmem:[%s1 + $0x74] sm:$0xff]
      %v286 = vld [vmem:[%s1 + $0x7c] sm:$0xff]
      %v287 = vld [vmem:[%s1 + $0x84] sm:$0xf]
      %v288 = vld [vmem:[%s1 + $0x88] sm:$0xff]
      %v289 = vld [vmem:[%s1 + $0x90] sm:$0xff]
      %v290 = vld [vmem:[%s1 + $0x98] sm:$0xff]
      %v291 = vld [vmem:[%s1 + $0xa0] sm:$0xff]
      %v292 = vld [vmem:[%s1 + $0xa8] sm:$0xff]
      %v293 = vld [vmem:[%s1 + $0xb0] sm:$0xff]
      %v294 = vld [vmem:[%s1 + $0xb8] sm:$0xff]
      %v295 = vld [vmem:[%s1 + $0xc0] sm:$0xff]
      %v296 = vld [vmem:[%s1 + $0xc8] sm:$0xf]
      %v297 = vld [vmem:[%s1 + $0xcc] sm:$0xff]
      %v298 = vld [vmem:[%s1 + $0xd4] sm:$0xff]
      %v299 = vld [vmem:[%s1 + $0xdc] sm:$0xff]
      %v300 = vld [vmem:[%s1 + $0xe4] sm:$0xff]
      %v301 = vld [vmem:[%s1 + $0xec] sm:$0xff]
      %v302 = vld [vmem:[%s1 + $0xf4] sm:$0xff]
      %v303 = vld [vmem:[%s1 + $0xfc] sm:$0xff]
      %v304 = vld [vmem:[%s1 + $0x104] sm:$0xff]
      %v305 = vld [vmem:[%s1 + $0x10c] sm:$0xf]
      %v306 = vld [vmem:[%s1 + $0x110] sm:$0xff]
      %v307 = vld [vmem:[%s1 + $0x118] sm:$0xff]
      %v308 = vld [vmem:[%s1 + $0x120] sm:$0xff]
      %v309 = vld [vmem:[%s1 + $0x128] sm:$0xff]
      %v310 = vld [vmem:[%s1 + $0x130] sm:$0xff]
      %v311 = vld [vmem:[%s1 + $0x138] sm:$0xff]
      %v312 = vld [vmem:[%s1 + $0x140] sm:$0xff]
      %v313 = vld [vmem:[%s1 + $0x148] sm:$0xff]
      %v314 = vld [vmem:[%s1 + $0x150] sm:$0xf]
      %v315 = vld [vmem:[%s1 + $0x154] sm:$0xff]
      %v316 = vld [vmem:[%s1 + $0x15c] sm:$0xff]
      %v317 = vld [vmem:[%s1 + $0x164] sm:$0xff]
      %v318 = vld [vmem:[%s1 + $0x16c] sm:$0xff]
      %v319 = vld [vmem:[%s1 + $0x174] sm:$0xff]
      %v320 = vld [vmem:[%s1 + $0x17c] sm:$0xff]
      %v321 = vld [vmem:[%s1 + $0x184] sm:$0xff]
      %v322 = vld [vmem:[%s1 + $0x18c] sm:$0xff]
      %v323 = vld [vmem:[%s1 + $0x194] sm:$0xf]
      %v324 = vld [vmem:[%s1 + $0x198] sm:$0xff]
      %v325 = vld [vmem:[%s1 + $0x1a0] sm:$0xff]
      %v326 = vld [vmem:[%s1 + $0x1a8] sm:$0xff]
      %v327 = vld [vmem:[%s1 + $0x1b0] sm:$0xff]
      %v328 = vld [vmem:[%s1 + $0x1b8] sm:$0xff]
      %v329 = vld [vmem:[%s1 + $0x1c0] sm:$0xff]
      %v330 = vld [vmem:[%s1 + $0x1c8] sm:$0xff]
      %v331 = vld [vmem:[%s1 + $0x1d0] sm:$0xff]
      %v332 = vld [vmem:[%s1 + $0x1d8] sm:$0xf]
      %v333 = vld [vmem:[%s1 + $0x1dc] sm:$0xff]
      %v334 = vld [vmem:[%s1 + $0x1e4] sm:$0xff]
      %v335 = vld [vmem:[%s1 + $0x1ec] sm:$0xff]
      %v336 = vld [vmem:[%s1 + $0x1f4] sm:$0xff]
      %v337 = vld [vmem:[%s1 + $0x1fc] sm:$0xff]
      %v338 = vld [vmem:[%s1 + $0x204] sm:$0xff]
      %v339 = vld [vmem:[%s1 + $0x20c] sm:$0xff]
      %v340 = vld [vmem:[%s1 + $0x214] sm:$0xff]
      %v341 = vld [vmem:[%s1 + $0x21c] sm:$0xf]
      %v342 = vld [vmem:[%s1 + $0x220] sm:$0xff]
      %v343 = vld [vmem:[%s1 + $0x228] sm:$0xff]
      %v344 = vld [vmem:[%s1 + $0x230] sm:$0xff]
      %v345 = vld [vmem:[%s1 + $0x238] sm:$0xff]
      %v346 = vld [vmem:[%s1 + $0x240] sm:$0xff]
      %v347 = vld [vmem:[%s1 + $0x248] sm:$0xff]
      %v348 = vld [vmem:[%s1 + $0x250] sm:$0xff]
      %v349 = vld [vmem:[%s1 + $0x258] sm:$0xff]
      %v350 = vld [vmem:[%s1 + $0x260] sm:$0xf]
      %v351 = vld [vmem:[%s1 + $0x264] sm:$0xff]
      %v352 = vld [vmem:[%s1 + $0x26c] sm:$0xff]
      %v353 = vld [vmem:[%s1 + $0x274] sm:$0xff]
      %v354 = vld [vmem:[%s1 + $0x27c] sm:$0xff]
      %v355 = vld [vmem:[%s1 + $0x284] sm:$0xff]
      %v356 = vld [vmem:[%s1 + $0x28c] sm:$0xff]
      %v357 = vld [vmem:[%s1 + $0x294] sm:$0xff]
      %v358 = vld [vmem:[%s1 + $0x29c] sm:$0xff]
      %v359 = vld [vmem:[%s1 + $0x2a4] sm:$0xf]
      %v360 = vld [vmem:[%s1 + $0x2a8] sm:$0xff]
      %v361 = vld [vmem:[%s1 + $0x2b0] sm:$0xff]
      %v362 = vld [vmem:[%s1 + $0x2b8] sm:$0xff]
      %v363 = vld [vmem:[%s1 + $0x2c0] sm:$0xff]
      %v364 = vld [vmem:[%s1 + $0x2c8] sm:$0xff]
      %v365 = vld [vmem:[%s1 + $0x2d0] sm:$0xff]
      %v366 = vld [vmem:[%s1 + $0x2d8] sm:$0xff]
      %v367 = vld [vmem:[%s1 + $0x2e0] sm:$0xff]
      %v368 = vld [vmem:[%s1 + $0x2e8] sm:$0xf]
      %v369 = vld [vmem:[%s1 + $0x2ec] sm:$0xff]
      %v370 = vld [vmem:[%s1 + $0x2f4] sm:$0xff]
      %v371 = vld [vmem:[%s1 + $0x2fc] sm:$0xff]
      %v372 = vld [vmem:[%s1 + $0x304] sm:$0xff]
      %v373 = vld [vmem:[%s1 + $0x30c] sm:$0xff]
      %v374 = vld [vmem:[%s1 + $0x314] sm:$0xff]
      %v375 = vld [vmem:[%s1 + $0x31c] sm:$0xff]
      %v376 = vld [vmem:[%s1 + $0x324] sm:$0xff]
      %v377 = vld [vmem:[%s1 + $0x32c] sm:$0xf]
      %v378 = vld [vmem:[%s1 + $0x330] sm:$0xff]
      %v379 = vld [vmem:[%s1 + $0x338] sm:$0xff]
      %v380 = vld [vmem:[%s1 + $0x340] sm:$0xff]
      %v381 = vld [vmem:[%s1 + $0x348] sm:$0xff]
      %v382 = vld [vmem:[%s1 + $0x350] sm:$0xff]
      %v383 = vld [vmem:[%s1 + $0x358] sm:$0xff]
      %v384 = vld [vmem:[%s1 + $0x360] sm:$0xff]
      %v385 = vld [vmem:[%s1 + $0x368] sm:$0xff]
      %v386 = vld [vmem:[%s1 + $0x370] sm:$0xf]
      %v387 = vld [vmem:[%s1 + $0x374] sm:$0xff]
      %v388 = vld [vmem:[%s1 + $0x37c] sm:$0xff]
      %v389 = vld [vmem:[%s1 + $0x384] sm:$0xff]
      %v390 = vld [vmem:[%s1 + $0x38c] sm:$0xff]
      %v391 = vld [vmem:[%s1 + $0x394] sm:$0xff]
      %v392 = vld [vmem:[%s1 + $0x39c] sm:$0xff]
      %v393 = vld [vmem:[%s1 + $0x3a4] sm:$0xff]
      %v394 = vld [vmem:[%s1 + $0x3ac] sm:$0xff]
      %v395 = vld [vmem:[%s1 + $0x3b4] sm:$0xf]
      %v396 = vld [vmem:[%s1 + $0x3b8] sm:$0xff]
      %v397 = vld [vmem:[%s1 + $0x3c0] sm:$0xff]
      %v398 = vld [vmem:[%s1 + $0x3c8] sm:$0xff]
      %v399 = vld [vmem:[%s1 + $0x3d0] sm:$0xff]
      %v400 = vld [vmem:[%s1 + $0x3d8] sm:$0xff]
      %v401 = vld [vmem:[%s1 + $0x3e0] sm:$0xff]
      %v402 = vld [vmem:[%s1 + $0x3e8] sm:$0xff]
      %v403 = vld [vmem:[%s1 + $0x3f0] sm:$0xff]
      %v404 = vld [vmem:[%s1 + $0x3f8] sm:$0xf]
      %v405 = vld [vmem:[%s1 + $0x3fc] sm:$0xff]
      %v406 = vld [vmem:[%s1 + $0x404] sm:$0xff]
      %v407 = vld [vmem:[%s1 + $0x40c] sm:$0xff]
      %v408 = vld [vmem:[%s1 + $0x414] sm:$0xff]
      %v409 = vld [vmem:[%s1 + $0x41c] sm:$0xff]
      %v410 = vld [vmem:[%s1 + $0x424] sm:$0xff]
      %v411 = vld [vmem:[%s1 + $0x42c] sm:$0xff]
      %v412 = vld [vmem:[%s1 + $0x434] sm:$0xff]
      %v413 = vld [vmem:[%s1 + $0x43c] sm:$0xf]
      %v558 = vunpack.c.l.b16 %v270
      %v559 = vunpack.c.h.b16 %v270
      %v560 = vunpack.c.l.b16 %v271
      %v561 = vunpack.c.h.b16 %v271
      %v562 = vunpack.c.l.b16 %v272
      %v563 = vunpack.c.h.b16 %v272
      %v564 = vunpack.c.l.b16 %v273
      %v565 = vunpack.c.h.b16 %v273
      %v566 = vunpack.c.l.b16 %v274
      %v567 = vunpack.c.h.b16 %v274
      %v568 = vunpack.c.l.b16 %v275
      %v569 = vunpack.c.h.b16 %v275
      %v570 = vunpack.c.l.b16 %v276
      %v571 = vunpack.c.h.b16 %v276
      %v572 = vunpack.c.l.b16 %v277
      %v573 = vunpack.c.h.b16 %v277
      %v574 = vunpack.c.l.b16 %v278
      %v575 = vunpack.c.l.b16 %v279
      %v576 = vunpack.c.h.b16 %v279
      %v577 = vunpack.c.l.b16 %v280
      %v578 = vunpack.c.h.b16 %v280
      %v579 = vunpack.c.l.b16 %v281
      %v580 = vunpack.c.h.b16 %v281
      %v581 = vunpack.c.l.b16 %v282
      %v582 = vunpack.c.h.b16 %v282
      %v583 = vunpack.c.l.b16 %v283
      %v584 = vunpack.c.h.b16 %v283
      %v585 = vunpack.c.l.b16 %v284
      %v586 = vunpack.c.h.b16 %v284
      %v587 = vunpack.c.l.b16 %v285
      %v588 = vunpack.c.h.b16 %v285
      %v589 = vunpack.c.l.b16 %v286
      %v590 = vunpack.c.h.b16 %v286
      %v591 = vunpack.c.l.b16 %v287
      %v592 = vunpack.c.l.b16 %v288
      %v593 = vunpack.c.h.b16 %v288
      %v594 = vunpack.c.l.b16 %v289
      %v595 = vunpack.c.h.b16 %v289
      %v596 = vunpack.c.l.b16 %v290
      %v597 = vunpack.c.h.b16 %v290
      %v598 = vunpack.c.l.b16 %v291
      %v599 = vunpack.c.h.b16 %v291
      %v600 = vunpack.c.l.b16 %v292
      %v601 = vunpack.c.h.b16 %v292
      %v602 = vunpack.c.l.b16 %v293
      %v603 = vunpack.c.h.b16 %v293
      %v604 = vunpack.c.l.b16 %v294
      %v605 = vunpack.c.h.b16 %v294
      %v606 = vunpack.c.l.b16 %v295
      %v607 = vunpack.c.h.b16 %v295
      %v608 = vunpack.c.l.b16 %v296
      %v609 = vunpack.c.l.b16 %v297
      %v610 = vunpack.c.h.b16 %v297
      %v611 = vunpack.c.l.b16 %v298
      %v612 = vunpack.c.h.b16 %v298
      %v613 = vunpack.c.l.b16 %v299
      %v614 = vunpack.c.h.b16 %v299
      %v615 = vunpack.c.l.b16 %v300
      %v616 = vunpack.c.h.b16 %v300
      %v617 = vunpack.c.l.b16 %v301
      %v618 = vunpack.c.h.b16 %v301
      %v619 = vunpack.c.l.b16 %v302
      %v620 = vunpack.c.h.b16 %v302
      %v621 = vunpack.c.l.b16 %v303
      %v622 = vunpack.c.h.b16 %v303
      %v623 = vunpack.c.l.b16 %v304
      %v624 = vunpack.c.h.b16 %v304
      %v625 = vunpack.c.l.b16 %v305
      %v626 = vunpack.c.l.b16 %v306
      %v627 = vunpack.c.h.b16 %v306
      %v628 = vunpack.c.l.b16 %v307
      %v629 = vunpack.c.h.b16 %v307
      %v630 = vunpack.c.l.b16 %v308
      %v631 = vunpack.c.h.b16 %v308
      %v632 = vunpack.c.l.b16 %v309
      %v633 = vunpack.c.h.b16 %v309
      %v634 = vunpack.c.l.b16 %v310
      %v635 = vunpack.c.h.b16 %v310
      %v636 = vunpack.c.l.b16 %v311
      %v637 = vunpack.c.h.b16 %v311
      %v638 = vunpack.c.l.b16 %v312
      %v639 = vunpack.c.h.b16 %v312
      %v640 = vunpack.c.l.b16 %v313
      %v641 = vunpack.c.h.b16 %v313
      %v642 = vunpack.c.l.b16 %v314
      %v643 = vunpack.c.l.b16 %v315
      %v644 = vunpack.c.h.b16 %v315
      %v645 = vunpack.c.l.b16 %v316
      %v646 = vunpack.c.h.b16 %v316
      %v647 = vunpack.c.l.b16 %v317
      %v648 = vunpack.c.h.b16 %v317
      %v649 = vunpack.c.l.b16 %v318
      %v650 = vunpack.c.h.b16 %v318
      %v651 = vunpack.c.l.b16 %v319
      %v652 = vunpack.c.h.b16 %v319
      %v653 = vunpack.c.l.b16 %v320
      %v654 = vunpack.c.h.b16 %v320
      %v655 = vunpack.c.l.b16 %v321
      %v656 = vunpack.c.h.b16 %v321
      %v657 = vunpack.c.l.b16 %v322
      %v658 = vunpack.c.h.b16 %v322
      %v659 = vunpack.c.l.b16 %v323
      %v660 = vunpack.c.l.b16 %v324
      %v661 = vunpack.c.h.b16 %v324
      %v662 = vunpack.c.l.b16 %v325
      %v663 = vunpack.c.h.b16 %v325
      %v664 = vunpack.c.l.b16 %v326
      %v665 = vunpack.c.h.b16 %v326
      %v666 = vunpack.c.l.b16 %v327
      %v667 = vunpack.c.h.b16 %v327
      %v668 = vunpack.c.l.b16 %v328
      %v669 = vunpack.c.h.b16 %v328
      %v670 = vunpack.c.l.b16 %v329
      %v671 = vunpack.c.h.b16 %v329
      %v672 = vunpack.c.l.b16 %v330
      %v673 = vunpack.c.h.b16 %v330
      %v674 = vunpack.c.l.b16 %v331
      %v675 = vunpack.c.h.b16 %v331
      %v676 = vunpack.c.l.b16 %v332
      %v677 = vunpack.c.l.b16 %v333
      %v678 = vunpack.c.h.b16 %v333
      %v679 = vunpack.c.l.b16 %v334
      %v680 = vunpack.c.h.b16 %v334
      %v681 = vunpack.c.l.b16 %v335
      %v682 = vunpack.c.h.b16 %v335
      %v683 = vunpack.c.l.b16 %v336
      %v684 = vunpack.c.h.b16 %v336
      %v685 = vunpack.c.l.b16 %v337
      %v686 = vunpack.c.h.b16 %v337
      %v687 = vunpack.c.l.b16 %v338
      %v688 = vunpack.c.h.b16 %v338
      %v689 = vunpack.c.l.b16 %v339
      %v690 = vunpack.c.h.b16 %v339
      %v691 = vunpack.c.l.b16 %v340
      %v692 = vunpack.c.h.b16 %v340
      %v693 = vunpack.c.l.b16 %v341
      %v694 = vunpack.c.l.b16 %v342
      %v695 = vunpack.c.h.b16 %v342
      %v696 = vunpack.c.l.b16 %v343
      %v697 = vunpack.c.h.b16 %v343
      %v698 = vunpack.c.l.b16 %v344
      %v699 = vunpack.c.h.b16 %v344
      %v700 = vunpack.c.l.b16 %v345
      %v701 = vunpack.c.h.b16 %v345
      %v702 = vunpack.c.l.b16 %v346
      %v703 = vunpack.c.h.b16 %v346
      %v704 = vunpack.c.l.b16 %v347
      %v705 = vunpack.c.h.b16 %v347
      %v706 = vunpack.c.l.b16 %v348
      %v707 = vunpack.c.h.b16 %v348
      %v708 = vunpack.c.l.b16 %v349
      %v709 = vunpack.c.h.b16 %v349
      %v710 = vunpack.c.l.b16 %v350
      %v711 = vunpack.c.l.b16 %v351
      %v712 = vunpack.c.h.b16 %v351
      %v713 = vunpack.c.l.b16 %v352
      %v714 = vunpack.c.h.b16 %v352
      %v715 = vunpack.c.l.b16 %v353
      %v716 = vunpack.c.h.b16 %v353
      %v717 = vunpack.c.l.b16 %v354
      %v718 = vunpack.c.h.b16 %v354
      %v719 = vunpack.c.l.b16 %v355
      %v720 = vunpack.c.h.b16 %v355
      %v721 = vunpack.c.l.b16 %v356
      %v722 = vunpack.c.h.b16 %v356
      %v723 = vunpack.c.l.b16 %v357
      %v724 = vunpack.c.h.b16 %v357
      %v725 = vunpack.c.l.b16 %v358
      %v726 = vunpack.c.h.b16 %v358
      %v727 = vunpack.c.l.b16 %v359
      %v728 = vunpack.c.l.b16 %v360
      %v729 = vunpack.c.h.b16 %v360
      %v730 = vunpack.c.l.b16 %v361
      %v731 = vunpack.c.h.b16 %v361
      %v732 = vunpack.c.l.b16 %v362
      %v733 = vunpack.c.h.b16 %v362
      %v734 = vunpack.c.l.b16 %v363
      %v735 = vunpack.c.h.b16 %v363
      %v736 = vunpack.c.l.b16 %v364
      %v737 = vunpack.c.h.b16 %v364
      %v738 = vunpack.c.l.b16 %v365
      %v739 = vunpack.c.h.b16 %v365
      %v740 = vunpack.c.l.b16 %v366
      %v741 = vunpack.c.h.b16 %v366
      %v742 = vunpack.c.l.b16 %v367
      %v743 = vunpack.c.h.b16 %v367
      %v744 = vunpack.c.l.b16 %v368
      %v745 = vunpack.c.l.b16 %v369
      %v746 = vunpack.c.h.b16 %v369
      %v747 = vunpack.c.l.b16 %v370
      %v748 = vunpack.c.h.b16 %v370
      %v749 = vunpack.c.l.b16 %v371
      %v750 = vunpack.c.h.b16 %v371
      %v751 = vunpack.c.l.b16 %v372
      %v752 = vunpack.c.h.b16 %v372
      %v753 = vunpack.c.l.b16 %v373
      %v754 = vunpack.c.h.b16 %v373
      %v755 = vunpack.c.l.b16 %v374
      %v756 = vunpack.c.h.b16 %v374
      %v757 = vunpack.c.l.b16 %v375
      %v758 = vunpack.c.h.b16 %v375
      %v759 = vunpack.c.l.b16 %v376
      %v760 = vunpack.c.h.b16 %v376
      %v761 = vunpack.c.l.b16 %v377
      %v762 = vunpack.c.l.b16 %v378
      %v763 = vunpack.c.h.b16 %v378
      %v764 = vunpack.c.l.b16 %v379
      %v765 = vunpack.c.h.b16 %v379
      %v766 = vunpack.c.l.b16 %v380
      %v767 = vunpack.c.h.b16 %v380
      %v768 = vunpack.c.l.b16 %v381
      %v769 = vunpack.c.h.b16 %v381
      %v770 = vunpack.c.l.b16 %v382
      %v771 = vunpack.c.h.b16 %v382
      %v772 = vunpack.c.l.b16 %v383
      %v773 = vunpack.c.h.b16 %v383
      %v774 = vunpack.c.l.b16 %v384
      %v775 = vunpack.c.h.b16 %v384
      %v776 = vunpack.c.l.b16 %v385
      %v777 = vunpack.c.h.b16 %v385
      %v778 = vunpack.c.l.b16 %v386
      %v779 = vunpack.c.l.b16 %v387
      %v780 = vunpack.c.h.b16 %v387
      %v781 = vunpack.c.l.b16 %v388
      %v782 = vunpack.c.h.b16 %v388
      %v783 = vunpack.c.l.b16 %v389
      %v784 = vunpack.c.h.b16 %v389
      %v785 = vunpack.c.l.b16 %v390
      %v786 = vunpack.c.h.b16 %v390
      %v787 = vunpack.c.l.b16 %v391
      %v788 = vunpack.c.h.b16 %v391
      %v789 = vunpack.c.l.b16 %v392
      %v790 = vunpack.c.h.b16 %v392
      %v791 = vunpack.c.l.b16 %v393
      %v792 = vunpack.c.h.b16 %v393
      %v793 = vunpack.c.l.b16 %v394
      %v794 = vunpack.c.h.b16 %v394
      %v795 = vunpack.c.l.b16 %v395
      %v796 = vunpack.c.l.b16 %v396
      %v797 = vunpack.c.h.b16 %v396
      %v798 = vunpack.c.l.b16 %v397
      %v799 = vunpack.c.h.b16 %v397
      %v800 = vunpack.c.l.b16 %v398
      %v801 = vunpack.c.h.b16 %v398
      %v802 = vunpack.c.l.b16 %v399
      %v803 = vunpack.c.h.b16 %v399
      %v804 = vunpack.c.l.b16 %v400
      %v805 = vunpack.c.h.b16 %v400
      %v806 = vunpack.c.l.b16 %v401
      %v807 = vunpack.c.h.b16 %v401
      %v808 = vunpack.c.l.b16 %v402
      %v809 = vunpack.c.h.b16 %v402
      %v810 = vunpack.c.l.b16 %v403
      %v811 = vunpack.c.h.b16 %v403
      %v812 = vunpack.c.l.b16 %v404
      %v813 = vunpack.c.l.b16 %v405
      %v814 = vunpack.c.h.b16 %v405
      %v815 = vunpack.c.l.b16 %v406
      %v816 = vunpack.c.h.b16 %v406
      %v817 = vunpack.c.l.b16 %v407
      %v818 = vunpack.c.h.b16 %v407
      %v819 = vunpack.c.l.b16 %v408
      %v820 = vunpack.c.h.b16 %v408
      %v821 = vunpack.c.l.b16 %v409
      %v822 = vunpack.c.h.b16 %v409
      %v823 = vunpack.c.l.b16 %v410
      %v824 = vunpack.c.h.b16 %v410
      %v825 = vunpack.c.l.b16 %v411
      %v826 = vunpack.c.h.b16 %v411
      %v827 = vunpack.c.l.b16 %v412
      %v828 = vunpack.c.h.b16 %v412
      %v829 = vunpack.c.l.b16 %v413
      %v830 = vpack.c.b16 %v575, %v558
      %v831 = vpack.c.b16 %v576, %v559
      %v832 = vpack.c.b16 %v577, %v560
      %v833 = vpack.c.b16 %v578, %v561
      %v834 = vpack.c.b16 %v579, %v562
      %v835 = vpack.c.b16 %v580, %v563
      %v836 = vpack.c.b16 %v581, %v564
      %v837 = vpack.c.b16 %v582, %v565
      %v838 = vpack.c.b16 %v583, %v566
      %v839 = vpack.c.b16 %v584, %v567
      %v840 = vpack.c.b16 %v585, %v568
      %v841 = vpack.c.b16 %v586, %v569
      %v842 = vpack.c.b16 %v587, %v570
      %v843 = vpack.c.b16 %v588, %v571
      %v844 = vpack.c.b16 %v589, %v572
      %v845 = vpack.c.b16 %v590, %v573
      %v846 = vpack.c.b16 %v591, %v574
      %v847 = vpack.c.b16 %v609, %v592
      %v848 = vpack.c.b16 %v610, %v593
      %v849 = vpack.c.b16 %v611, %v594
      %v850 = vpack.c.b16 %v612, %v595
      %v851 = vpack.c.b16 %v613, %v596
      %v852 = vpack.c.b16 %v614, %v597
      %v853 = vpack.c.b16 %v615, %v598
      %v854 = vpack.c.b16 %v616, %v599
      %v855 = vpack.c.b16 %v617, %v600
      %v856 = vpack.c.b16 %v618, %v601
      %v857 = vpack.c.b16 %v619, %v602
      %v858 = vpack.c.b16 %v620, %v603
      %v859 = vpack.c.b16 %v621, %v604
      %v860 = vpack.c.b16 %v622, %v605
      %v861 = vpack.c.b16 %v623, %v606
      %v862 = vpack.c.b16 %v624, %v607
      %v863 = vpack.c.b16 %v625, %v608
      %v864 = vpack.c.b16 %v643, %v626
      %v865 = vpack.c.b16 %v644, %v627
      %v866 = vpack.c.b16 %v645, %v628
      %v867 = vpack.c.b16 %v646, %v629
      %v868 = vpack.c.b16 %v647, %v630
      %v869 = vpack.c.b16 %v648, %v631
      %v870 = vpack.c.b16 %v649, %v632
      %v871 = vpack.c.b16 %v650, %v633
      %v872 = vpack.c.b16 %v651, %v634
      %v873 = vpack.c.b16 %v652, %v635
      %v874 = vpack.c.b16 %v653, %v636
      %v875 = vpack.c.b16 %v654, %v637
      %v876 = vpack.c.b16 %v655, %v638
      %v877 = vpack.c.b16 %v656, %v639
      %v878 = vpack.c.b16 %v657, %v640
      %v879 = vpack.c.b16 %v658, %v641
      %v880 = vpack.c.b16 %v659, %v642
      %v881 = vpack.c.b16 %v677, %v660
      %v882 = vpack.c.b16 %v678, %v661
      %v883 = vpack.c.b16 %v679, %v662
      %v884 = vpack.c.b16 %v680, %v663
      %v885 = vpack.c.b16 %v681, %v664
      %v886 = vpack.c.b16 %v682, %v665
      %v887 = vpack.c.b16 %v683, %v666
      %v888 = vpack.c.b16 %v684, %v667
      %v889 = vpack.c.b16 %v685, %v668
      %v890 = vpack.c.b16 %v686, %v669
      %v891 = vpack.c.b16 %v687, %v670
      %v892 = vpack.c.b16 %v688, %v671
      %v893 = vpack.c.b16 %v689, %v672
      %v894 = vpack.c.b16 %v690, %v673
      %v895 = vpack.c.b16 %v691, %v674
      %v896 = vpack.c.b16 %v692, %v675
      %v897 = vpack.c.b16 %v693, %v676
      %v898 = vpack.c.b16 %v711, %v694
      %v899 = vpack.c.b16 %v712, %v695
      %v900 = vpack.c.b16 %v713, %v696
      %v901 = vpack.c.b16 %v714, %v697
      %v902 = vpack.c.b16 %v715, %v698
      %v903 = vpack.c.b16 %v716, %v699
      %v904 = vpack.c.b16 %v717, %v700
      %v905 = vpack.c.b16 %v718, %v701
      %v906 = vpack.c.b16 %v719, %v702
      %v907 = vpack.c.b16 %v720, %v703
      %v908 = vpack.c.b16 %v721, %v704
      %v909 = vpack.c.b16 %v722, %v705
      %v910 = vpack.c.b16 %v723, %v706
      %v911 = vpack.c.b16 %v724, %v707
      %v912 = vpack.c.b16 %v725, %v708
      %v913 = vpack.c.b16 %v726, %v709
      %v914 = vpack.c.b16 %v727, %v710
      %v915 = vpack.c.b16 %v745, %v728
      %v916 = vpack.c.b16 %v746, %v729
      %v917 = vpack.c.b16 %v747, %v730
      %v918 = vpack.c.b16 %v748, %v731
      %v919 = vpack.c.b16 %v749, %v732
      %v920 = vpack.c.b16 %v750, %v733
      %v921 = vpack.c.b16 %v751, %v734
      %v922 = vpack.c.b16 %v752, %v735
      %v923 = vpack.c.b16 %v753, %v736
      %v924 = vpack.c.b16 %v754, %v737
      %v925 = vpack.c.b16 %v755, %v738
      %v926 = vpack.c.b16 %v756, %v739
      %v927 = vpack.c.b16 %v757, %v740
      %v928 = vpack.c.b16 %v758, %v741
      %v929 = vpack.c.b16 %v759, %v742
      %v930 = vpack.c.b16 %v760, %v743
      %v931 = vpack.c.b16 %v761, %v744
      %v932 = vpack.c.b16 %v779, %v762
      %v933 = vpack.c.b16 %v780, %v763
      %v934 = vpack.c.b16 %v781, %v764
      %v935 = vpack.c.b16 %v782, %v765
      %v936 = vpack.c.b16 %v783, %v766
      %v937 = vpack.c.b16 %v784, %v767
      %v938 = vpack.c.b16 %v785, %v768
      %v939 = vpack.c.b16 %v786, %v769
      %v940 = vpack.c.b16 %v787, %v770
      %v941 = vpack.c.b16 %v788, %v771
      %v942 = vpack.c.b16 %v789, %v772
      %v943 = vpack.c.b16 %v790, %v773
      %v944 = vpack.c.b16 %v791, %v774
      %v945 = vpack.c.b16 %v792, %v775
      %v946 = vpack.c.b16 %v793, %v776
      %v947 = vpack.c.b16 %v794, %v777
      %v948 = vpack.c.b16 %v795, %v778
      %v949 = vpack.c.b16 %v813, %v796
      %v950 = vpack.c.b16 %v814, %v797
      %v951 = vpack.c.b16 %v815, %v798
      %v952 = vpack.c.b16 %v816, %v799
      %v953 = vpack.c.b16 %v817, %v800
      %v954 = vpack.c.b16 %v818, %v801
      %v955 = vpack.c.b16 %v819, %v802
      %v956 = vpack.c.b16 %v820, %v803
      %v957 = vpack.c.b16 %v821, %v804
      %v958 = vpack.c.b16 %v822, %v805
      %v959 = vpack.c.b16 %v823, %v806
      %v960 = vpack.c.b16 %v824, %v807
      %v961 = vpack.c.b16 %v825, %v808
      %v962 = vpack.c.b16 %v826, %v809
      %v963 = vpack.c.b16 %v827, %v810
      %v964 = vpack.c.b16 %v828, %v811
      %v965 = vpack.c.b16 %v829, %v812
      %1102 = vmatpush.bf16.msra.mxu0 %v949
      %1103 = vmatpush.bf16.msra.mxu0 %v932
      %1104 = vmatpush.bf16.msra.mxu0 %v915
      %1105 = vmatpush.bf16.msra.mxu0 %v898
      %1106 = vmatpush.bf16.msra.mxu0 %v881
      %1107 = vmatpush.bf16.msra.mxu0 %v864
      %1108 = vmatpush.bf16.msra.mxu0 %v847
      %1109 = vmatpush.bf16.msra.mxu0 %v830
      %1110 = vmatmul.bf16.gmra.mxu0 %v268
      %v1111 = vpop.f32.mrf.mxu0
      %v1112 = vadd.f32 0.0, %v1111
      %v1113 = vpop.f32.mrf.mxu0
      %v1114 = vadd.f32 0.0, %v1113
      %1115 = vmatmul.bf16.gmra.mxu0 %v269
      %v1116 = vpop.f32.mrf.mxu0
      %v1117 = vadd.f32 0.0, %v1116
      %v1118 = vpop.f32.mrf.mxu0
      %v1119 = vadd.f32 0.0, %v1118
      %1120 = vdwg.mxu0
      %1121 = vmatpush.bf16.msra.mxu0 %v950
      %1122 = vmatpush.bf16.msra.mxu0 %v933
      %1123 = vmatpush.bf16.msra.mxu0 %v916
      %1124 = vmatpush.bf16.msra.mxu0 %v899
      %1125 = vmatpush.bf16.msra.mxu0 %v882
      %1126 = vmatpush.bf16.msra.mxu0 %v865
      %1127 = vmatpush.bf16.msra.mxu0 %v848
      %1128 = vmatpush.bf16.msra.mxu0 %v831
      %1129 = vmatmul.bf16.gmra.mxu0 %v268
      %v1130 = vpop.f32.mrf.mxu0
      %v1131 = vadd.f32 0.0, %v1130
      %v1132 = vpop.f32.mrf.mxu0
      %v1133 = vadd.f32 0.0, %v1132
      %1134 = vmatmul.bf16.gmra.mxu0 %v269
      %v1135 = vpop.f32.mrf.mxu0
      %v1136 = vadd.f32 0.0, %v1135
      %v1137 = vpop.f32.mrf.mxu0
      %v1138 = vadd.f32 0.0, %v1137
      %1139 = vdwg.mxu0
      %1140 = vmatpush.bf16.msra.mxu0 %v951
      %1141 = vmatpush.bf16.msra.mxu0 %v934
      %1142 = vmatpush.bf16.msra.mxu0 %v917
      %1143 = vmatpush.bf16.msra.mxu0 %v900
      %1144 = vmatpush.bf16.msra.mxu0 %v883
      %1145 = vmatpush.bf16.msra.mxu0 %v866
      %1146 = vmatpush.bf16.msra.mxu0 %v849
      %1147 = vmatpush.bf16.msra.mxu0 %v832
      %1148 = vmatmul.bf16.gmra.mxu0 %v268
      %v1149 = vpop.f32.mrf.mxu0
      %v1150 = vadd.f32 0.0, %v1149
      %v1151 = vpop.f32.mrf.mxu0
      %v1152 = vadd.f32 0.0, %v1151
      %1153 = vmatmul.bf16.gmra.mxu0 %v269
      %v1154 = vpop.f32.mrf.mxu0
      %v1155 = vadd.f32 0.0, %v1154
      %v1156 = vpop.f32.mrf.mxu0
      %v1157 = vadd.f32 0.0, %v1156
      %1158 = vdwg.mxu0
      %1159 = vmatpush.bf16.msra.mxu0 %v952
      %1160 = vmatpush.bf16.msra.mxu0 %v935
      %1161 = vmatpush.bf16.msra.mxu0 %v918
      %1162 = vmatpush.bf16.msra.mxu0 %v901
      %1163 = vmatpush.bf16.msra.mxu0 %v884
      %1164 = vmatpush.bf16.msra.mxu0 %v867
      %1165 = vmatpush.bf16.msra.mxu0 %v850
      %1166 = vmatpush.bf16.msra.mxu0 %v833
      %1167 = vmatmul.bf16.gmra.mxu0 %v268
      %v1168 = vpop.f32.mrf.mxu0
      %v1169 = vadd.f32 0.0, %v1168
      %v1170 = vpop.f32.mrf.mxu0
      %v1171 = vadd.f32 0.0, %v1170
      %1172 = vmatmul.bf16.gmra.mxu0 %v269
      %v1173 = vpop.f32.mrf.mxu0
      %v1174 = vadd.f32 0.0, %v1173
      %v1175 = vpop.f32.mrf.mxu0
      %v1176 = vadd.f32 0.0, %v1175
      %1177 = vdwg.mxu0
      %1178 = vmatpush.bf16.msra.mxu0 %v953
      %1179 = vmatpush.bf16.msra.mxu0 %v936
      %1180 = vmatpush.bf16.msra.mxu0 %v919
      %1181 = vmatpush.bf16.msra.mxu0 %v902
      %1182 = vmatpush.bf16.msra.mxu0 %v885
      %1183 = vmatpush.bf16.msra.mxu0 %v868
      %1184 = vmatpush.bf16.msra.mxu0 %v851
      %1185 = vmatpush.bf16.msra.mxu0 %v834
      %1186 = vmatmul.bf16.gmra.mxu0 %v268
      %v1187 = vpop.f32.mrf.mxu0
      %v1188 = vadd.f32 0.0, %v1187
      %v1189 = vpop.f32.mrf.mxu0
      %v1190 = vadd.f32 0.0, %v1189
      %1191 = vmatmul.bf16.gmra.mxu0 %v269
      %v1192 = vpop.f32.mrf.mxu0
      %v1193 = vadd.f32 0.0, %v1192
      %v1194 = vpop.f32.mrf.mxu0
      %v1195 = vadd.f32 0.0, %v1194
      %1196 = vdwg.mxu0
      %1197 = vmatpush.bf16.msra.mxu0 %v954
      %1198 = vmatpush.bf16.msra.mxu0 %v937
      %1199 = vmatpush.bf16.msra.mxu0 %v920
      %1200 = vmatpush.bf16.msra.mxu0 %v903
      %1201 = vmatpush.bf16.msra.mxu0 %v886
      %1202 = vmatpush.bf16.msra.mxu0 %v869
      %1203 = vmatpush.bf16.msra.mxu0 %v852
      %1204 = vmatpush.bf16.msra.mxu0 %v835
      %1205 = vmatmul.bf16.gmra.mxu0 %v268
      %v1206 = vpop.f32.mrf.mxu0
      %v1207 = vadd.f32 0.0, %v1206
      %v1208 = vpop.f32.mrf.mxu0
      %v1209 = vadd.f32 0.0, %v1208
      %1210 = vmatmul.bf16.gmra.mxu0 %v269
      %v1211 = vpop.f32.mrf.mxu0
      %v1212 = vadd.f32 0.0, %v1211
      %v1213 = vpop.f32.mrf.mxu0
      %v1214 = vadd.f32 0.0, %v1213
      %1215 = vdwg.mxu0
      %1216 = vmatpush.bf16.msra.mxu0 %v955
      %1217 = vmatpush.bf16.msra.mxu0 %v938
      %1218 = vmatpush.bf16.msra.mxu0 %v921
      %1219 = vmatpush.bf16.msra.mxu0 %v904
      %1220 = vmatpush.bf16.msra.mxu0 %v887
      %1221 = vmatpush.bf16.msra.mxu0 %v870
      %1222 = vmatpush.bf16.msra.mxu0 %v853
      %1223 = vmatpush.bf16.msra.mxu0 %v836
      %1224 = vmatmul.bf16.gmra.mxu0 %v268
      %v1225 = vpop.f32.mrf.mxu0
      %v1226 = vadd.f32 0.0, %v1225
      %v1227 = vpop.f32.mrf.mxu0
      %v1228 = vadd.f32 0.0, %v1227
      %1229 = vmatmul.bf16.gmra.mxu0 %v269
      %v1230 = vpop.f32.mrf.mxu0
      %v1231 = vadd.f32 0.0, %v1230
      %v1232 = vpop.f32.mrf.mxu0
      %v1233 = vadd.f32 0.0, %v1232
      %1234 = vdwg.mxu0
      %1235 = vmatpush.bf16.msra.mxu0 %v956
      %1236 = vmatpush.bf16.msra.mxu0 %v939
      %1237 = vmatpush.bf16.msra.mxu0 %v922
      %1238 = vmatpush.bf16.msra.mxu0 %v905
      %1239 = vmatpush.bf16.msra.mxu0 %v888
      %1240 = vmatpush.bf16.msra.mxu0 %v871
      %1241 = vmatpush.bf16.msra.mxu0 %v854
      %1242 = vmatpush.bf16.msra.mxu0 %v837
      %1243 = vmatmul.bf16.gmra.mxu0 %v268
      %v1244 = vpop.f32.mrf.mxu0
      %v1245 = vadd.f32 0.0, %v1244
      %v1246 = vpop.f32.mrf.mxu0
      %v1247 = vadd.f32 0.0, %v1246
      %1248 = vmatmul.bf16.gmra.mxu0 %v269
      %v1249 = vpop.f32.mrf.mxu0
      %v1250 = vadd.f32 0.0, %v1249
      %v1251 = vpop.f32.mrf.mxu0
      %v1252 = vadd.f32 0.0, %v1251
      %1253 = vdwg.mxu0
      %1254 = vmatpush.bf16.msra.mxu0 %v957
      %1255 = vmatpush.bf16.msra.mxu0 %v940
      %1256 = vmatpush.bf16.msra.mxu0 %v923
      %1257 = vmatpush.bf16.msra.mxu0 %v906
      %1258 = vmatpush.bf16.msra.mxu0 %v889
      %1259 = vmatpush.bf16.msra.mxu0 %v872
      %1260 = vmatpush.bf16.msra.mxu0 %v855
      %1261 = vmatpush.bf16.msra.mxu0 %v838
      %1262 = vmatmul.bf16.gmra.mxu0 %v268
      %v1263 = vpop.f32.mrf.mxu0
      %v1264 = vadd.f32 0.0, %v1263
      %v1265 = vpop.f32.mrf.mxu0
      %v1266 = vadd.f32 0.0, %v1265
      %1267 = vmatmul.bf16.gmra.mxu0 %v269
      %v1268 = vpop.f32.mrf.mxu0
      %v1269 = vadd.f32 0.0, %v1268
      %v1270 = vpop.f32.mrf.mxu0
      %v1271 = vadd.f32 0.0, %v1270
      %1272 = vdwg.mxu0
      %1273 = vmatpush.bf16.msra.mxu0 %v958
      %1274 = vmatpush.bf16.msra.mxu0 %v941
      %1275 = vmatpush.bf16.msra.mxu0 %v924
      %1276 = vmatpush.bf16.msra.mxu0 %v907
      %1277 = vmatpush.bf16.msra.mxu0 %v890
      %1278 = vmatpush.bf16.msra.mxu0 %v873
      %1279 = vmatpush.bf16.msra.mxu0 %v856
      %1280 = vmatpush.bf16.msra.mxu0 %v839
      %1281 = vmatmul.bf16.gmra.mxu0 %v268
      %v1282 = vpop.f32.mrf.mxu0
      %v1283 = vadd.f32 0.0, %v1282
      %v1284 = vpop.f32.mrf.mxu0
      %v1285 = vadd.f32 0.0, %v1284
      %1286 = vmatmul.bf16.gmra.mxu0 %v269
      %v1287 = vpop.f32.mrf.mxu0
      %v1288 = vadd.f32 0.0, %v1287
      %v1289 = vpop.f32.mrf.mxu0
      %v1290 = vadd.f32 0.0, %v1289
      %1291 = vdwg.mxu0
      %1292 = vmatpush.bf16.msra.mxu0 %v959
      %1293 = vmatpush.bf16.msra.mxu0 %v942
      %1294 = vmatpush.bf16.msra.mxu0 %v925
      %1295 = vmatpush.bf16.msra.mxu0 %v908
      %1296 = vmatpush.bf16.msra.mxu0 %v891
      %1297 = vmatpush.bf16.msra.mxu0 %v874
      %1298 = vmatpush.bf16.msra.mxu0 %v857
      %1299 = vmatpush.bf16.msra.mxu0 %v840
      %1300 = vmatmul.bf16.gmra.mxu0 %v268
      %v1301 = vpop.f32.mrf.mxu0
      %v1302 = vadd.f32 0.0, %v1301
      %v1303 = vpop.f32.mrf.mxu0
      %v1304 = vadd.f32 0.0, %v1303
      %1305 = vmatmul.bf16.gmra.mxu0 %v269
      %v1306 = vpop.f32.mrf.mxu0
      %v1307 = vadd.f32 0.0, %v1306
      %v1308 = vpop.f32.mrf.mxu0
      %v1309 = vadd.f32 0.0, %v1308
      %1310 = vdwg.mxu0
      %1311 = vmatpush.bf16.msra.mxu0 %v960
      %1312 = vmatpush.bf16.msra.mxu0 %v943
      %1313 = vmatpush.bf16.msra.mxu0 %v926
      %1314 = vmatpush.bf16.msra.mxu0 %v909
      %1315 = vmatpush.bf16.msra.mxu0 %v892
      %1316 = vmatpush.bf16.msra.mxu0 %v875
      %1317 = vmatpush.bf16.msra.mxu0 %v858
      %1318 = vmatpush.bf16.msra.mxu0 %v841
      %1319 = vmatmul.bf16.gmra.mxu0 %v268
      %v1320 = vpop.f32.mrf.mxu0
      %v1321 = vadd.f32 0.0, %v1320
      %v1322 = vpop.f32.mrf.mxu0
      %v1323 = vadd.f32 0.0, %v1322
      %1324 = vmatmul.bf16.gmra.mxu0 %v269
      %v1325 = vpop.f32.mrf.mxu0
      %v1326 = vadd.f32 0.0, %v1325
      %v1327 = vpop.f32.mrf.mxu0
      %v1328 = vadd.f32 0.0, %v1327
      %1329 = vdwg.mxu0
      %1330 = vmatpush.bf16.msra.mxu0 %v961
      %1331 = vmatpush.bf16.msra.mxu0 %v944
      %1332 = vmatpush.bf16.msra.mxu0 %v927
      %1333 = vmatpush.bf16.msra.mxu0 %v910
      %1334 = vmatpush.bf16.msra.mxu0 %v893
      %1335 = vmatpush.bf16.msra.mxu0 %v876
      %1336 = vmatpush.bf16.msra.mxu0 %v859
      %1337 = vmatpush.bf16.msra.mxu0 %v842
      %1338 = vmatmul.bf16.gmra.mxu0 %v268
      %v1339 = vpop.f32.mrf.mxu0
      %v1340 = vadd.f32 0.0, %v1339
      %v1341 = vpop.f32.mrf.mxu0
      %v1342 = vadd.f32 0.0, %v1341
      %1343 = vmatmul.bf16.gmra.mxu0 %v269
      %v1344 = vpop.f32.mrf.mxu0
      %v1345 = vadd.f32 0.0, %v1344
      %v1346 = vpop.f32.mrf.mxu0
      %v1347 = vadd.f32 0.0, %v1346
      %1348 = vdwg.mxu0
      %1349 = vmatpush.bf16.msra.mxu0 %v962
      %1350 = vmatpush.bf16.msra.mxu0 %v945
      %1351 = vmatpush.bf16.msra.mxu0 %v928
      %1352 = vmatpush.bf16.msra.mxu0 %v911
      %1353 = vmatpush.bf16.msra.mxu0 %v894
      %1354 = vmatpush.bf16.msra.mxu0 %v877
      %1355 = vmatpush.bf16.msra.mxu0 %v860
      %1356 = vmatpush.bf16.msra.mxu0 %v843
      %1357 = vmatmul.bf16.gmra.mxu0 %v268
      %v1358 = vpop.f32.mrf.mxu0
      %v1359 = vadd.f32 0.0, %v1358
      %v1360 = vpop.f32.mrf.mxu0
      %v1361 = vadd.f32 0.0, %v1360
      %1362 = vmatmul.bf16.gmra.mxu0 %v269
      %v1363 = vpop.f32.mrf.mxu0
      %v1364 = vadd.f32 0.0, %v1363
      %v1365 = vpop.f32.mrf.mxu0
      %v1366 = vadd.f32 0.0, %v1365
      %1367 = vdwg.mxu0
      %1368 = vmatpush.bf16.msra.mxu0 %v963
      %1369 = vmatpush.bf16.msra.mxu0 %v946
      %1370 = vmatpush.bf16.msra.mxu0 %v929
      %1371 = vmatpush.bf16.msra.mxu0 %v912
      %1372 = vmatpush.bf16.msra.mxu0 %v895
      %1373 = vmatpush.bf16.msra.mxu0 %v878
      %1374 = vmatpush.bf16.msra.mxu0 %v861
      %1375 = vmatpush.bf16.msra.mxu0 %v844
      %1376 = vmatmul.bf16.gmra.mxu0 %v268
      %v1377 = vpop.f32.mrf.mxu0
      %v1378 = vadd.f32 0.0, %v1377
      %v1379 = vpop.f32.mrf.mxu0
      %v1380 = vadd.f32 0.0, %v1379
      %1381 = vmatmul.bf16.gmra.mxu0 %v269
      %v1382 = vpop.f32.mrf.mxu0
      %v1383 = vadd.f32 0.0, %v1382
      %v1384 = vpop.f32.mrf.mxu0
      %v1385 = vadd.f32 0.0, %v1384
      %1386 = vdwg.mxu0
      %1387 = vmatpush.bf16.msra.mxu0 %v964
      %1388 = vmatpush.bf16.msra.mxu0 %v947
      %1389 = vmatpush.bf16.msra.mxu0 %v930
      %1390 = vmatpush.bf16.msra.mxu0 %v913
      %1391 = vmatpush.bf16.msra.mxu0 %v896
      %1392 = vmatpush.bf16.msra.mxu0 %v879
      %1393 = vmatpush.bf16.msra.mxu0 %v862
      %1394 = vmatpush.bf16.msra.mxu0 %v845
      %1395 = vmatmul.bf16.gmra.mxu0 %v268
      %v1396 = vpop.f32.mrf.mxu0
      %v1397 = vadd.f32 0.0, %v1396
      %v1398 = vpop.f32.mrf.mxu0
      %v1399 = vadd.f32 0.0, %v1398
      %1400 = vmatmul.bf16.gmra.mxu0 %v269
      %v1401 = vpop.f32.mrf.mxu0
      %v1402 = vadd.f32 0.0, %v1401
      %v1403 = vpop.f32.mrf.mxu0
      %v1404 = vadd.f32 0.0, %v1403
      %1405 = vdwg.mxu0
      %1406 = vmatpush.bf16.msra.mxu0 %v965
      %1407 = vmatpush.bf16.msra.mxu0 %v948
      %1408 = vmatpush.bf16.msra.mxu0 %v931
      %1409 = vmatpush.bf16.msra.mxu0 %v914
      %1410 = vmatpush.bf16.msra.mxu0 %v897
      %1411 = vmatpush.bf16.msra.mxu0 %v880
      %1412 = vmatpush.bf16.msra.mxu0 %v863
      %1413 = vmatpush.bf16.msra.mxu0 %v846
      %1414 = vmatmul.bf16.gmra.mxu0 %v268
      %v1415 = vpop.f32.mrf.mxu0
      %v1416 = vadd.f32 0.0, %v1415
      %v1417 = vpop.f32.mrf.mxu0
      %v1418 = vadd.f32 0.0, %v1417
      %1419 = vmatmul.bf16.gmra.mxu0 %v269
      %v1420 = vpop.f32.mrf.mxu0
      %v1421 = vadd.f32 0.0, %v1420
      %v1422 = vpop.f32.mrf.mxu0
      %v1423 = vadd.f32 0.0, %v1422
      %1424 = vdwg.mxu0
      %v1425 = vld [vmem:[%s4] sm:$0x1]
      %v1427 = vperm.slane %v1425, 0
      %v1429 = vadd.f32 %v1112, %v1427
      %v1430 = vadd.f32 %v1114, %v1427
      %v1431 = vadd.f32 %v1117, %v1427
      %v1432 = vadd.f32 %v1119, %v1427
      %v1433 = vmax.f32 %v1429, 0.0
      %v1434 = vmax.f32 %v1430, 0.0
      %v1435 = vmax.f32 %v1431, 0.0
      %v1436 = vmax.f32 %v1432, 0.0
      %vm1437 = vcmp.ne.f32.partialorder %v1429, %v1429
      %vm1438 = vcmp.ne.f32.partialorder %v1430, %v1430
      %vm1439 = vcmp.ne.f32.partialorder %v1431, %v1431
      %vm1440 = vcmp.ne.f32.partialorder %v1432, %v1432
      %v1441 = vadd.f32 %v1429, 0.0
      %v1442 = vadd.f32 %v1430, 0.0
      %v1443 = vadd.f32 %v1431, 0.0
      %v1444 = vadd.f32 %v1432, 0.0
      %v1445 = vand.u32 2147483647, %v1429
      %v1446 = vand.u32 2147483647, %v1430
      %v1447 = vand.u32 2147483647, %v1431
      %v1448 = vand.u32 2147483647, %v1432
      %v1449 = vsub.f32 0.0, %v1445
      %v1450 = vsub.f32 0.0, %v1446
      %v1451 = vsub.f32 0.0, %v1447
      %v1452 = vsub.f32 0.0, %v1448
      %v1453 = vmul.f32 %v1449, 1.442695
      %v1454 = vpow.pop %v1453
      %v1455 = vmul.f32 %v1450, 1.442695
      %v1456 = vpow.pop %v1455
      %v1457 = vmul.f32 %v1451, 1.442695
      %v1458 = vpow.pop %v1457
      %v1459 = vmul.f32 %v1452, 1.442695
      %v1460 = vpow.pop %v1459
      %v1461 = vadd.f32 %v1454, 1.0
      %v1462 = vlog2.pop %v1461
      %v1463 = vmul.f32 %v1462, 0.6931472
      %v1464 = vmul.f32 -0.5, %v1454
      %v1465 = vadd.f32 %v1464, 1.0
      %v1466 = vmul.f32 %v1465, %v1454
      %v1467 = vand.u32 2147483647, %v1454
      %vm1468 = vcmp.lt.f32.partialorder %v1467, 0.0004427343
      %v1469 = vsel %vm1468, %v1466, %v1463
      %v1470 = vadd.f32 %v1456, 1.0
      %v1471 = vlog2.pop %v1470
      %v1472 = vmul.f32 %v1471, 0.6931472
      %v1473 = vmul.f32 -0.5, %v1456
      %v1474 = vadd.f32 %v1473, 1.0
      %v1475 = vmul.f32 %v1474, %v1456
      %v1476 = vand.u32 2147483647, %v1456
      %vm1477 = vcmp.lt.f32.partialorder %v1476, 0.0004427343
      %v1478 = vsel %vm1477, %v1475, %v1472
      %v1479 = vadd.f32 %v1458, 1.0
      %v1480 = vlog2.pop %v1479
      %v1481 = vmul.f32 %v1480, 0.6931472
      %v1482 = vmul.f32 -0.5, %v1458
      %v1483 = vadd.f32 %v1482, 1.0
      %v1484 = vmul.f32 %v1483, %v1458
      %v1485 = vand.u32 2147483647, %v1458
      %vm1486 = vcmp.lt.f32.partialorder %v1485, 0.0004427343
      %v1487 = vsel %vm1486, %v1484, %v1481
      %v1488 = vadd.f32 %v1460, 1.0
      %v1489 = vlog2.pop %v1488
      %v1490 = vmul.f32 %v1489, 0.6931472
      %v1491 = vmul.f32 -0.5, %v1460
      %v1492 = vadd.f32 %v1491, 1.0
      %v1493 = vmul.f32 %v1492, %v1460
      %v1494 = vand.u32 2147483647, %v1460
      %vm1495 = vcmp.lt.f32.partialorder %v1494, 0.0004427343
      %v1496 = vsel %vm1495, %v1493, %v1490
      %v1497 = vadd.f32 %v1433, %v1469
      %v1498 = vadd.f32 %v1434, %v1478
      %v1499 = vadd.f32 %v1435, %v1487
      %v1500 = vadd.f32 %v1436, %v1496
      %v1501 = vsel %vm1437, %v1441, %v1497
      %v1502 = vsel %vm1438, %v1442, %v1498
      %v1503 = vsel %vm1439, %v1443, %v1499
      %v1504 = vsel %vm1440, %v1444, %v1500
      %v1505 = vmul.f32 %v1501, %v264
      %v1506 = vmul.f32 %v1502, %v265
      %v1507 = vmul.f32 %v1503, %v266
      %v1508 = vmul.f32 %v1504, %v267
      %v1509 = vld [vmem:[%s2] sm:$0x1]
      %v1511 = vperm.slane %v1509, 0
      %v1513 = vmul.f32 %v1501, %v1511
      %v1514 = vmul.f32 %v1502, %v1511
      %v1515 = vmul.f32 %v1503, %v1511
      %v1516 = vmul.f32 %v1504, %v1511
      %v1517 = vmul.f32 %v1513, 1.442695
      %v1518 = vpow.pop %v1517
      %v1519 = vmul.f32 %v1514, 1.442695
      %v1520 = vpow.pop %v1519
      %v1521 = vmul.f32 %v1515, 1.442695
      %v1522 = vpow.pop %v1521
      %v1523 = vmul.f32 %v1516, 1.442695
      %v1524 = vpow.pop %v1523
      %1525 = vst [vmem:[#allocation3] sm:$0xff] %v1518
      %1526 = vst [vmem:[#allocation3 + $0x40] sm:$0xff] %v1520
      %1527 = vst [vmem:[#allocation3 + $0x80] sm:$0xff] %v1522
      %1528 = vst [vmem:[#allocation3 + $0xc0] sm:$0xff] %v1524
      %v1529 = vmul.f32 %v1131, %v1505
      %v1530 = vmul.f32 %v1133, %v1506
      %v1531 = vmul.f32 %v1136, %v1507
      %v1532 = vmul.f32 %v1138, %v1508
      %1533 = vst [vmem:[#allocation4] sm:$0xff] %v1529
      %1534 = vst [vmem:[#allocation4 + $0x40] sm:$0xff] %v1530
      %1535 = vst [vmem:[#allocation4 + $0x80] sm:$0xff] %v1531
      %1536 = vst [vmem:[#allocation4 + $0xc0] sm:$0xff] %v1532
      %v1537 = vld [vmem:[%s2 + $0x1] sm:$0x1]
      %v1539 = vperm.slane %v1537, 0
      %v1541 = vmul.f32 %v1501, %v1539
      %v1542 = vmul.f32 %v1502, %v1539
      %v1543 = vmul.f32 %v1503, %v1539
      %v1544 = vmul.f32 %v1504, %v1539
      %v1545 = vmul.f32 %v1541, 1.442695
      %v1546 = vpow.pop %v1545
      %v1547 = vmul.f32 %v1542, 1.442695
      %v1548 = vpow.pop %v1547
      %v1549 = vmul.f32 %v1543, 1.442695
      %v1550 = vpow.pop %v1549
      %v1551 = vmul.f32 %v1544, 1.442695
      %v1552 = vpow.pop %v1551
      %1553 = vst [vmem:[#allocation3 + $0x8] sm:$0xff] %v1546
      %1554 = vst [vmem:[#allocation3 + $0x48] sm:$0xff] %v1548
      %1555 = vst [vmem:[#allocation3 + $0x88] sm:$0xff] %v1550
      %1556 = vst [vmem:[#allocation3 + $0xc8] sm:$0xff] %v1552
      %v1557 = vmul.f32 %v1150, %v1505
      %v1558 = vmul.f32 %v1152, %v1506
      %v1559 = vmul.f32 %v1155, %v1507
      %v1560 = vmul.f32 %v1157, %v1508
      %1561 = vst [vmem:[#allocation4 + $0x8] sm:$0xff] %v1557
      %1562 = vst [vmem:[#allocation4 + $0x48] sm:$0xff] %v1558
      %1563 = vst [vmem:[#allocation4 + $0x88] sm:$0xff] %v1559
      %1564 = vst [vmem:[#allocation4 + $0xc8] sm:$0xff] %v1560
      %v1565 = vld [vmem:[%s2 + $0x2] sm:$0x1]
      %v1567 = vperm.slane %v1565, 0
      %v1569 = vmul.f32 %v1501, %v1567
      %v1570 = vmul.f32 %v1502, %v1567
      %v1571 = vmul.f32 %v1503, %v1567
      %v1572 = vmul.f32 %v1504, %v1567
      %v1573 = vmul.f32 %v1569, 1.442695
      %v1574 = vpow.pop %v1573
      %v1575 = vmul.f32 %v1570, 1.442695
      %v1576 = vpow.pop %v1575
      %v1577 = vmul.f32 %v1571, 1.442695
      %v1578 = vpow.pop %v1577
      %v1579 = vmul.f32 %v1572, 1.442695
      %v1580 = vpow.pop %v1579
      %1581 = vst [vmem:[#allocation3 + $0x10] sm:$0xff] %v1574
      %1582 = vst [vmem:[#allocation3 + $0x50] sm:$0xff] %v1576
      %1583 = vst [vmem:[#allocation3 + $0x90] sm:$0xff] %v1578
      %1584 = vst [vmem:[#allocation3 + $0xd0] sm:$0xff] %v1580
      %v1585 = vmul.f32 %v1169, %v1505
      %v1586 = vmul.f32 %v1171, %v1506
      %v1587 = vmul.f32 %v1174, %v1507
      %v1588 = vmul.f32 %v1176, %v1508
      %1589 = vst [vmem:[#allocation4 + $0x10] sm:$0xff] %v1585
      %1590 = vst [vmem:[#allocation4 + $0x50] sm:$0xff] %v1586
      %1591 = vst [vmem:[#allocation4 + $0x90] sm:$0xff] %v1587
      %1592 = vst [vmem:[#allocation4 + $0xd0] sm:$0xff] %v1588
      %v1593 = vld [vmem:[%s2 + $0x3] sm:$0x1]
      %v1595 = vperm.slane %v1593, 0
      %v1597 = vmul.f32 %v1501, %v1595
      %v1598 = vmul.f32 %v1502, %v1595
      %v1599 = vmul.f32 %v1503, %v1595
      %v1600 = vmul.f32 %v1504, %v1595
      %v1601 = vmul.f32 %v1597, 1.442695
      %v1602 = vpow.pop %v1601
      %v1603 = vmul.f32 %v1598, 1.442695
      %v1604 = vpow.pop %v1603
      %v1605 = vmul.f32 %v1599, 1.442695
      %v1606 = vpow.pop %v1605
      %v1607 = vmul.f32 %v1600, 1.442695
      %v1608 = vpow.pop %v1607
      %1609 = vst [vmem:[#allocation3 + $0x18] sm:$0xff] %v1602
      %1610 = vst [vmem:[#allocation3 + $0x58] sm:$0xff] %v1604
      %1611 = vst [vmem:[#allocation3 + $0x98] sm:$0xff] %v1606
      %1612 = vst [vmem:[#allocation3 + $0xd8] sm:$0xff] %v1608
      %v1613 = vmul.f32 %v1188, %v1505
      %v1614 = vmul.f32 %v1190, %v1506
      %v1615 = vmul.f32 %v1193, %v1507
      %v1616 = vmul.f32 %v1195, %v1508
      %1617 = vst [vmem:[#allocation4 + $0x18] sm:$0xff] %v1613
      %1618 = vst [vmem:[#allocation4 + $0x58] sm:$0xff] %v1614
      %1619 = vst [vmem:[#allocation4 + $0x98] sm:$0xff] %v1615
      %1620 = vst [vmem:[#allocation4 + $0xd8] sm:$0xff] %v1616
      %v1621 = vld [vmem:[%s2 + $0x4] sm:$0x1]
      %v1623 = vperm.slane %v1621, 0
      %v1625 = vmul.f32 %v1501, %v1623
      %v1626 = vmul.f32 %v1502, %v1623
      %v1627 = vmul.f32 %v1503, %v1623
      %v1628 = vmul.f32 %v1504, %v1623
      %v1629 = vmul.f32 %v1625, 1.442695
      %v1630 = vpow.pop %v1629
      %v1631 = vmul.f32 %v1626, 1.442695
      %v1632 = vpow.pop %v1631
      %v1633 = vmul.f32 %v1627, 1.442695
      %v1634 = vpow.pop %v1633
      %v1635 = vmul.f32 %v1628, 1.442695
      %v1636 = vpow.pop %v1635
      %1637 = vst [vmem:[#allocation3 + $0x20] sm:$0xff] %v1630
      %1638 = vst [vmem:[#allocation3 + $0x60] sm:$0xff] %v1632
      %1639 = vst [vmem:[#allocation3 + $0xa0] sm:$0xff] %v1634
      %1640 = vst [vmem:[#allocation3 + $0xe0] sm:$0xff] %v1636
      %v1641 = vmul.f32 %v1207, %v1505
      %v1642 = vmul.f32 %v1209, %v1506
      %v1643 = vmul.f32 %v1212, %v1507
      %v1644 = vmul.f32 %v1214, %v1508
      %1645 = vst [vmem:[#allocation4 + $0x20] sm:$0xff] %v1641
      %1646 = vst [vmem:[#allocation4 + $0x60] sm:$0xff] %v1642
      %1647 = vst [vmem:[#allocation4 + $0xa0] sm:$0xff] %v1643
      %1648 = vst [vmem:[#allocation4 + $0xe0] sm:$0xff] %v1644
      %v1649 = vld [vmem:[%s2 + $0x5] sm:$0x1]
      %v1651 = vperm.slane %v1649, 0
      %v1653 = vmul.f32 %v1501, %v1651
      %v1654 = vmul.f32 %v1502, %v1651
      %v1655 = vmul.f32 %v1503, %v1651
      %v1656 = vmul.f32 %v1504, %v1651
      %v1657 = vmul.f32 %v1653, 1.442695
      %v1658 = vpow.pop %v1657
      %v1659 = vmul.f32 %v1654, 1.442695
      %v1660 = vpow.pop %v1659
      %v1661 = vmul.f32 %v1655, 1.442695
      %v1662 = vpow.pop %v1661
      %v1663 = vmul.f32 %v1656, 1.442695
      %v1664 = vpow.pop %v1663
      %1665 = vst [vmem:[#allocation3 + $0x28] sm:$0xff] %v1658
      %1666 = vst [vmem:[#allocation3 + $0x68] sm:$0xff] %v1660
      %1667 = vst [vmem:[#allocation3 + $0xa8] sm:$0xff] %v1662
      %1668 = vst [vmem:[#allocation3 + $0xe8] sm:$0xff] %v1664
      %v1669 = vmul.f32 %v1226, %v1505
      %v1670 = vmul.f32 %v1228, %v1506
      %v1671 = vmul.f32 %v1231, %v1507
      %v1672 = vmul.f32 %v1233, %v1508
      %1673 = vst [vmem:[#allocation4 + $0x28] sm:$0xff] %v1669
      %1674 = vst [vmem:[#allocation4 + $0x68] sm:$0xff] %v1670
      %1675 = vst [vmem:[#allocation4 + $0xa8] sm:$0xff] %v1671
      %1676 = vst [vmem:[#allocation4 + $0xe8] sm:$0xff] %v1672
      %v1677 = vld [vmem:[%s2 + $0x6] sm:$0x1]
      %v1679 = vperm.slane %v1677, 0
      %v1681 = vmul.f32 %v1501, %v1679
      %v1682 = vmul.f32 %v1502, %v1679
      %v1683 = vmul.f32 %v1503, %v1679
      %v1684 = vmul.f32 %v1504, %v1679
      %v1685 = vmul.f32 %v1681, 1.442695
      %v1686 = vpow.pop %v1685
      %v1687 = vmul.f32 %v1682, 1.442695
      %v1688 = vpow.pop %v1687
      %v1689 = vmul.f32 %v1683, 1.442695
      %v1690 = vpow.pop %v1689
      %v1691 = vmul.f32 %v1684, 1.442695
      %v1692 = vpow.pop %v1691
      %1693 = vst [vmem:[#allocation3 + $0x30] sm:$0xff] %v1686
      %1694 = vst [vmem:[#allocation3 + $0x70] sm:$0xff] %v1688
      %1695 = vst [vmem:[#allocation3 + $0xb0] sm:$0xff] %v1690
      %1696 = vst [vmem:[#allocation3 + $0xf0] sm:$0xff] %v1692
      %v1697 = vmul.f32 %v1245, %v1505
      %v1698 = vmul.f32 %v1247, %v1506
      %v1699 = vmul.f32 %v1250, %v1507
      %v1700 = vmul.f32 %v1252, %v1508
      %1701 = vst [vmem:[#allocation4 + $0x30] sm:$0xff] %v1697
      %1702 = vst [vmem:[#allocation4 + $0x70] sm:$0xff] %v1698
      %1703 = vst [vmem:[#allocation4 + $0xb0] sm:$0xff] %v1699
      %1704 = vst [vmem:[#allocation4 + $0xf0] sm:$0xff] %v1700
      %v1705 = vld [vmem:[%s2 + $0x7] sm:$0x1]
      %v1707 = vperm.slane %v1705, 0
      %v1709 = vmul.f32 %v1501, %v1707
      %v1710 = vmul.f32 %v1502, %v1707
      %v1711 = vmul.f32 %v1503, %v1707
      %v1712 = vmul.f32 %v1504, %v1707
      %v1713 = vmul.f32 %v1709, 1.442695
      %v1714 = vpow.pop %v1713
      %v1715 = vmul.f32 %v1710, 1.442695
      %v1716 = vpow.pop %v1715
      %v1717 = vmul.f32 %v1711, 1.442695
      %v1718 = vpow.pop %v1717
      %v1719 = vmul.f32 %v1712, 1.442695
      %v1720 = vpow.pop %v1719
      %1721 = vst [vmem:[#allocation3 + $0x38] sm:$0xff] %v1714
      %1722 = vst [vmem:[#allocation3 + $0x78] sm:$0xff] %v1716
      %1723 = vst [vmem:[#allocation3 + $0xb8] sm:$0xff] %v1718
      %1724 = vst [vmem:[#allocation3 + $0xf8] sm:$0xff] %v1720
      %v1725 = vmul.f32 %v1264, %v1505
      %v1726 = vmul.f32 %v1266, %v1506
      %v1727 = vmul.f32 %v1269, %v1507
      %v1728 = vmul.f32 %v1271, %v1508
      %1729 = vst [vmem:[#allocation4 + $0x38] sm:$0xff] %v1725
      %1730 = vst [vmem:[#allocation4 + $0x78] sm:$0xff] %v1726
      %1731 = vst [vmem:[#allocation4 + $0xb8] sm:$0xff] %v1727
      %1732 = vst [vmem:[#allocation4 + $0xf8] sm:$0xff] %v1728
      %1733 = vst [vmem:[#allocation5] sm:$0xff] %v1283
      %1734 = vst [vmem:[#allocation5 + $0x8] sm:$0xff] %v1302
      %1735 = vst [vmem:[#allocation5 + $0x10] sm:$0xff] %v1321
      %1736 = vst [vmem:[#allocation5 + $0x18] sm:$0xff] %v1340
      %1737 = vst [vmem:[#allocation5 + $0x20] sm:$0xff] %v1359
      %1738 = vst [vmem:[#allocation5 + $0x28] sm:$0xff] %v1378
      %1739 = vst [vmem:[#allocation5 + $0x30] sm:$0xff] %v1397
      %1740 = vst [vmem:[#allocation5 + $0x38] sm:$0xff] %v1416
      %1741 = vst [vmem:[#allocation5 + $0x40] sm:$0xff] %v1285
      %1742 = vst [vmem:[#allocation5 + $0x48] sm:$0xff] %v1304
      %1743 = vst [vmem:[#allocation5 + $0x50] sm:$0xff] %v1323
      %1744 = vst [vmem:[#allocation5 + $0x58] sm:$0xff] %v1342
      %1745 = vst [vmem:[#allocation5 + $0x60] sm:$0xff] %v1361
      %1746 = vst [vmem:[#allocation5 + $0x68] sm:$0xff] %v1380
      %1747 = vst [vmem:[#allocation5 + $0x70] sm:$0xff] %v1399
      %1748 = vst [vmem:[#allocation5 + $0x78] sm:$0xff] %v1418
      %1749 = vst [vmem:[#allocation5 + $0x80] sm:$0xff] %v1288
      %1750 = vst [vmem:[#allocation5 + $0x88] sm:$0xff] %v1307
      %1751 = vst [vmem:[#allocation5 + $0x90] sm:$0xff] %v1326
      %1752 = vst [vmem:[#allocation5 + $0x98] sm:$0xff] %v1345
      %1753 = vst [vmem:[#allocation5 + $0xa0] sm:$0xff] %v1364
      %1754 = vst [vmem:[#allocation5 + $0xa8] sm:$0xff] %v1383
      %1755 = vst [vmem:[#allocation5 + $0xb0] sm:$0xff] %v1402
      %1756 = vst [vmem:[#allocation5 + $0xb8] sm:$0xff] %v1421
      %1757 = vst [vmem:[#allocation5 + $0xc0] sm:$0xff] %v1290
      %1758 = vst [vmem:[#allocation5 + $0xc8] sm:$0xff] %v1309
      %1759 = vst [vmem:[#allocation5 + $0xd0] sm:$0xff] %v1328
      %1760 = vst [vmem:[#allocation5 + $0xd8] sm:$0xff] %v1347
      %1761 = vst [vmem:[#allocation5 + $0xe0] sm:$0xff] %v1366
      %1762 = vst [vmem:[#allocation5 + $0xe8] sm:$0xff] %v1385
      %1763 = vst [vmem:[#allocation5 + $0xf0] sm:$0xff] %v1404
      %1764 = vst [vmem:[#allocation5 + $0xf8] sm:$0xff] %v1423
      %p1765 = scmp.eq.s32.totalorder %s21, 0
      // Predicated region
      $region41: #{ss2d_forward.1} parent=39 // pred_check
        %p1766 = pneg %p1765
      $region42: #{ss2d_forward.1} parent=39 // pred_check_branch
        %1768 = sbr.rel (%p1766) target = $region44
      $region43: #{ss2d_forward.1} parent=39 // pred_region
        %1769 = vst [vmem:[#allocation2] sm:$0xff] 0.0
      $region44: #{ss2d_forward.1} parent=39 // pred_fallthru
        _
      %v1770 = vld [vmem:[%s3] sm:$0x1]
      %v1772 = vperm.slane %v1770, 0
      %v1774 = vld [vmem:[#allocation2] sm:$0xff]
      %v1776 = vperm.slane %v1774, 0
      %v1777 = vperm.slane %v1774, 1
      %v1778 = vperm.slane %v1774, 2
      %v1779 = vperm.slane %v1774, 3
      %v1780 = vperm.slane %v1774, 4
      %v1781 = vperm.slane %v1774, 5
      %v1782 = vperm.slane %v1774, 6
      %v1783 = vperm.slane %v1774, 7
      loop: start=0, step=1, limit=4
      $region45: #{ss2d_forward.1} parent=39 // loop_pre_header
        _
      $region46: #{ss2d_forward.1} parent=39 // loop_header
        %s1793 = sphi 0, %s1797
        %p1794 = scmp.ge.s32.totalorder %s1793, 4
        %v1798 = vphi %v1776, %v2160
        %v1799 = vphi %v1777, %v2161
        %v1800 = vphi %v1778, %v2162
        %v1801 = vphi %v1779, %v2163
        %v1802 = vphi %v1780, %v2164
        %v1803 = vphi %v1781, %v2165
        %v1804 = vphi %v1782, %v2166
        %v1805 = vphi %v1783, %v2167
      $region47: #{ss2d_forward.1} parent=39 // loop_header_branch
        %1796 = sbr.rel (%p1794) target = $region51
      $region48: #{ss2d_forward.1} parent=39 // loop_body
        %s1806 = smul.u32 %s1793, 8
        %s1807 = sshra.s32 %s1806, 3
        %s1808 = sand.u32 %s1806, 7
        %s1809 = smul.u32 %s1807, 8
        %s1810 = smul.addr %s1809, 8
        %s1811 = scalar_lea.vmem [#allocation3], %s1810
        %v1812 = vld [vmem:[%s1811] sm:$0xff]
        %v1813 = vld [vmem:[%s1811 + $0x8] sm:$0xff]
        %v1814 = vld [vmem:[%s1811 + $0x10] sm:$0xff]
        %v1815 = vld [vmem:[%s1811 + $0x18] sm:$0xff]
        %v1816 = vld [vmem:[%s1811 + $0x20] sm:$0xff]
        %v1817 = vld [vmem:[%s1811 + $0x28] sm:$0xff]
        %v1818 = vld [vmem:[%s1811 + $0x30] sm:$0xff]
        %v1819 = vld [vmem:[%s1811 + $0x38] sm:$0xff]
        %s1820 = smul.addr %s1809, 8
        %s1821 = scalar_lea.vmem [#allocation4], %s1820
        %v1822 = vld [vmem:[%s1821] sm:$0xff]
        %v1823 = vld [vmem:[%s1821 + $0x8] sm:$0xff]
        %v1824 = vld [vmem:[%s1821 + $0x10] sm:$0xff]
        %v1825 = vld [vmem:[%s1821 + $0x18] sm:$0xff]
        %v1826 = vld [vmem:[%s1821 + $0x20] sm:$0xff]
        %v1827 = vld [vmem:[%s1821 + $0x28] sm:$0xff]
        %v1828 = vld [vmem:[%s1821 + $0x30] sm:$0xff]
        %v1829 = vld [vmem:[%s1821 + $0x38] sm:$0xff]
        %v1838 = vrot.slane %v1812, 7
        %v1839 = vrot.slane %v1813, 7
        %v1840 = vrot.slane %v1814, 7
        %v1841 = vrot.slane %v1815, 7
        %v1842 = vrot.slane %v1816, 7
        %v1843 = vrot.slane %v1817, 7
        %v1844 = vrot.slane %v1818, 7
        %v1845 = vrot.slane %v1819, 7
        %vm1854 = vcmask 1040384
        %v1855 = vsel %vm1854, 1.0, %v1838
        %v1856 = vsel %vm1854, 1.0, %v1839
        %v1857 = vsel %vm1854, 1.0, %v1840
        %v1858 = vsel %vm1854, 1.0, %v1841
        %v1859 = vsel %vm1854, 1.0, %v1842
        %v1860 = vsel %vm1854, 1.0, %v1843
        %v1861 = vsel %vm1854, 1.0, %v1844
        %v1862 = vsel %vm1854, 1.0, %v1845
        %v1871 = vrot.slane %v1822, 7
        %v1872 = vrot.slane %v1823, 7
        %v1873 = vrot.slane %v1824, 7
        %v1874 = vrot.slane %v1825, 7
        %v1875 = vrot.slane %v1826, 7
        %v1876 = vrot.slane %v1827, 7
        %v1877 = vrot.slane %v1828, 7
        %v1878 = vrot.slane %v1829, 7
        %v1887 = vsel %vm1854, 0.0, %v1871
        %v1888 = vsel %vm1854, 0.0, %v1872
        %v1889 = vsel %vm1854, 0.0, %v1873
        %v1890 = vsel %vm1854, 0.0, %v1874
        %v1891 = vsel %vm1854, 0.0, %v1875
        %v1892 = vsel %vm1854, 0.0, %v1876
        %v1893 = vsel %vm1854, 0.0, %v1877
        %v1894 = vsel %vm1854, 0.0, %v1878
        %v1895 = vmul.f32 %v1812, %v1887
        %v1896 = vmul.f32 %v1813, %v1888
        %v1897 = vmul.f32 %v1814, %v1889
        %v1898 = vmul.f32 %v1815, %v1890
        %v1899 = vmul.f32 %v1816, %v1891
        %v1900 = vmul.f32 %v1817, %v1892
        %v1901 = vmul.f32 %v1818, %v1893
        %v1902 = vmul.f32 %v1819, %v1894
        %v1903 = vadd.f32 %v1895, %v1822
        %v1904 = vadd.f32 %v1896, %v1823
        %v1905 = vadd.f32 %v1897, %v1824
        %v1906 = vadd.f32 %v1898, %v1825
        %v1907 = vadd.f32 %v1899, %v1826
        %v1908 = vadd.f32 %v1900, %v1827
        %v1909 = vadd.f32 %v1901, %v1828
        %v1910 = vadd.f32 %v1902, %v1829
        %v1911 = vmul.f32 %v1812, %v1855
        %v1912 = vmul.f32 %v1813, %v1856
        %v1913 = vmul.f32 %v1814, %v1857
        %v1914 = vmul.f32 %v1815, %v1858
        %v1915 = vmul.f32 %v1816, %v1859
        %v1916 = vmul.f32 %v1817, %v1860
        %v1917 = vmul.f32 %v1818, %v1861
        %v1918 = vmul.f32 %v1819, %v1862
        %v1927 = vrot.slane %v1911, 6
        %v1928 = vrot.slane %v1912, 6
        %v1929 = vrot.slane %v1913, 6
        %v1930 = vrot.slane %v1914, 6
        %v1931 = vrot.slane %v1915, 6
        %v1932 = vrot.slane %v1916, 6
        %v1933 = vrot.slane %v1917, 6
        %v1934 = vrot.slane %v1918, 6
        %vm1943 = vcmask 1041408
        %v1944 = vsel %vm1943, 1.0, %v1927
        %v1945 = vsel %vm1943, 1.0, %v1928
        %v1946 = vsel %vm1943, 1.0, %v1929
        %v1947 = vsel %vm1943, 1.0, %v1930
        %v1948 = vsel %vm1943, 1.0, %v1931
        %v1949 = vsel %vm1943, 1.0, %v1932
        %v1950 = vsel %vm1943, 1.0, %v1933
        %v1951 = vsel %vm1943, 1.0, %v1934
        %v1960 = vrot.slane %v1903, 6
        %v1961 = vrot.slane %v1904, 6
        %v1962 = vrot.slane %v1905, 6
        %v1963 = vrot.slane %v1906, 6
        %v1964 = vrot.slane %v1907, 6
        %v1965 = vrot.slane %v1908, 6
        %v1966 = vrot.slane %v1909, 6
        %v1967 = vrot.slane %v1910, 6
        %v1976 = vsel %vm1943, 0.0, %v1960
        %v1977 = vsel %vm1943, 0.0, %v1961
        %v1978 = vsel %vm1943, 0.0, %v1962
        %v1979 = vsel %vm1943, 0.0, %v1963
        %v1980 = vsel %vm1943, 0.0, %v1964
        %v1981 = vsel %vm1943, 0.0, %v1965
        %v1982 = vsel %vm1943, 0.0, %v1966
        %v1983 = vsel %vm1943, 0.0, %v1967
        %v1984 = vmul.f32 %v1911, %v1976
        %v1985 = vmul.f32 %v1912, %v1977
        %v1986 = vmul.f32 %v1913, %v1978
        %v1987 = vmul.f32 %v1914, %v1979
        %v1988 = vmul.f32 %v1915, %v1980
        %v1989 = vmul.f32 %v1916, %v1981
        %v1990 = vmul.f32 %v1917, %v1982
        %v1991 = vmul.f32 %v1918, %v1983
        %v1992 = vadd.f32 %v1984, %v1903
        %v1993 = vadd.f32 %v1985, %v1904
        %v1994 = vadd.f32 %v1986, %v1905
        %v1995 = vadd.f32 %v1987, %v1906
        %v1996 = vadd.f32 %v1988, %v1907
        %v1997 = vadd.f32 %v1989, %v1908
        %v1998 = vadd.f32 %v1990, %v1909
        %v1999 = vadd.f32 %v1991, %v1910
        %v2000 = vmul.f32 %v1911, %v1944
        %v2001 = vmul.f32 %v1912, %v1945
        %v2002 = vmul.f32 %v1913, %v1946
        %v2003 = vmul.f32 %v1914, %v1947
        %v2004 = vmul.f32 %v1915, %v1948
        %v2005 = vmul.f32 %v1916, %v1949
        %v2006 = vmul.f32 %v1917, %v1950
        %v2007 = vmul.f32 %v1918, %v1951
        %v2016 = vrot.slane %v2000, 4
        %v2017 = vrot.slane %v2001, 4
        %v2018 = vrot.slane %v2002, 4
        %v2019 = vrot.slane %v2003, 4
        %v2020 = vrot.slane %v2004, 4
        %v2021 = vrot.slane %v2005, 4
        %v2022 = vrot.slane %v2006, 4
        %v2023 = vrot.slane %v2007, 4
        %vm2032 = vcmask 1043456
        %v2033 = vsel %vm2032, 1.0, %v2016
        %v2034 = vsel %vm2032, 1.0, %v2017
        %v2035 = vsel %vm2032, 1.0, %v2018
        %v2036 = vsel %vm2032, 1.0, %v2019
        %v2037 = vsel %vm2032, 1.0, %v2020
        %v2038 = vsel %vm2032, 1.0, %v2021
        %v2039 = vsel %vm2032, 1.0, %v2022
        %v2040 = vsel %vm2032, 1.0, %v2023
        %v2049 = vrot.slane %v1992, 4
        %v2050 = vrot.slane %v1993, 4
        %v2051 = vrot.slane %v1994, 4
        %v2052 = vrot.slane %v1995, 4
        %v2053 = vrot.slane %v1996, 4
        %v2054 = vrot.slane %v1997, 4
        %v2055 = vrot.slane %v1998, 4
        %v2056 = vrot.slane %v1999, 4
        %v2065 = vsel %vm2032, 0.0, %v2049
        %v2066 = vsel %vm2032, 0.0, %v2050
        %v2067 = vsel %vm2032, 0.0, %v2051
        %v2068 = vsel %vm2032, 0.0, %v2052
        %v2069 = vsel %vm2032, 0.0, %v2053
        %v2070 = vsel %vm2032, 0.0, %v2054
        %v2071 = vsel %vm2032, 0.0, %v2055
        %v2072 = vsel %vm2032, 0.0, %v2056
        %v2073 = vmul.f32 %v2000, %v2065
        %v2074 = vmul.f32 %v2001, %v2066
        %v2075 = vmul.f32 %v2002, %v2067
        %v2076 = vmul.f32 %v2003, %v2068
        %v2077 = vmul.f32 %v2004, %v2069
        %v2078 = vmul.f32 %v2005, %v2070
        %v2079 = vmul.f32 %v2006, %v2071
        %v2080 = vmul.f32 %v2007, %v2072
        %v2081 = vadd.f32 %v2073, %v1992
        %v2082 = vadd.f32 %v2074, %v1993
        %v2083 = vadd.f32 %v2075, %v1994
        %v2084 = vadd.f32 %v2076, %v1995
        %v2085 = vadd.f32 %v2077, %v1996
        %v2086 = vadd.f32 %v2078, %v1997
        %v2087 = vadd.f32 %v2079, %v1998
        %v2088 = vadd.f32 %v2080, %v1999
        %v2089 = vmul.f32 %v2000, %v2033
        %v2090 = vmul.f32 %v2001, %v2034
        %v2091 = vmul.f32 %v2002, %v2035
        %v2092 = vmul.f32 %v2003, %v2036
        %v2093 = vmul.f32 %v2004, %v2037
        %v2094 = vmul.f32 %v2005, %v2038
        %v2095 = vmul.f32 %v2006, %v2039
        %v2096 = vmul.f32 %v2007, %v2040
        %v2097 = vperm.slane %v1798, 0
        %v2098 = vperm.slane %v1799, 0
        %v2099 = vperm.slane %v1800, 0
        %v2100 = vperm.slane %v1801, 0
        %v2101 = vperm.slane %v1802, 0
        %v2102 = vperm.slane %v1803, 0
        %v2103 = vperm.slane %v1804, 0
        %v2104 = vperm.slane %v1805, 0
        %v2105 = vmul.f32 %v2089, %v2097
        %v2106 = vmul.f32 %v2090, %v2098
        %v2107 = vmul.f32 %v2091, %v2099
        %v2108 = vmul.f32 %v2092, %v2100
        %v2109 = vmul.f32 %v2093, %v2101
        %v2110 = vmul.f32 %v2094, %v2102
        %v2111 = vmul.f32 %v2095, %v2103
        %v2112 = vmul.f32 %v2096, %v2104
        %v2113 = vadd.f32 %v2105, %v2081
        %v2114 = vadd.f32 %v2106, %v2082
        %v2115 = vadd.f32 %v2107, %v2083
        %v2116 = vadd.f32 %v2108, %v2084
        %v2117 = vadd.f32 %v2109, %v2085
        %v2118 = vadd.f32 %v2110, %v2086
        %v2119 = vadd.f32 %v2111, %v2087
        %v2120 = vadd.f32 %v2112, %v2088
        %s2121 = smul.addr %s1809, 8
        %s2122 = scalar_lea.vmem [#allocation5], %s2121
        %v2123 = vld [vmem:[%s2122] sm:$0xff]
        %v2124 = vld [vmem:[%s2122 + $0x8] sm:$0xff]
        %v2125 = vld [vmem:[%s2122 + $0x10] sm:$0xff]
        %v2126 = vld [vmem:[%s2122 + $0x18] sm:$0xff]
        %v2127 = vld [vmem:[%s2122 + $0x20] sm:$0xff]
        %v2128 = vld [vmem:[%s2122 + $0x28] sm:$0xff]
        %v2129 = vld [vmem:[%s2122 + $0x30] sm:$0xff]
        %v2130 = vld [vmem:[%s2122 + $0x38] sm:$0xff]
        %v2131 = vmul.f32 %v2113, %v2123
        %v2132 = vmul.f32 %v2114, %v2124
        %v2133 = vmul.f32 %v2115, %v2125
        %v2134 = vmul.f32 %v2116, %v2126
        %v2135 = vmul.f32 %v2117, %v2127
        %v2136 = vmul.f32 %v2118, %v2128
        %v2137 = vmul.f32 %v2119, %v2129
        %v2138 = vmul.f32 %v2120, %v2130
        %v2139 = vadd.f32 %v2131, %v2132
        %v2140 = vadd.f32 %v2139, %v2133
        %v2141 = vadd.f32 %v2140, %v2134
        %v2142 = vadd.f32 %v2141, %v2135
        %v2143 = vadd.f32 %v2142, %v2136
        %v2144 = vadd.f32 %v2143, %v2137
        %v2145 = vadd.f32 %v2144, %v2138
        %s2146 = scalar_lea.vmem %s252, %s1806
        %v2147 = vld [vmem:[%s2146] sm:$0xff]
        %v2148 = vmul.f32 %v2147, %v1772
        %v2149 = vadd.f32 %v2145, %v2148
        %s2150 = scalar_lea.vmem %s262, %s1806
        %2151 = vst [vmem:[%s2150] sm:$0xff] %v2149
        %v2160 = vrot.slane %v2113, 7
        %v2161 = vrot.slane %v2114, 7
        %v2162 = vrot.slane %v2115, 7
        %v2163 = vrot.slane %v2116, 7
        %v2164 = vrot.slane %v2117, 7
        %v2165 = vrot.slane %v2118, 7
        %v2166 = vrot.slane %v2119, 7
        %v2167 = vrot.slane %v2120, 7
      $region49: #{ss2d_forward.1} parent=39 // loop_footer
        %s1797 = sadd.s32 1, %s1793
      $region50: #{ss2d_forward.1} parent=39 // loop_footer_branch
        %1792 = sbr.rel target = $region46
      $region51: #{ss2d_forward.1} parent=39 // loop_exit
        _
      %v2184 = vrot.slane %v1799, 7
      %v2185 = vrot.slane %v1800, 6
      %v2186 = vrot.slane %v1801, 5
      %v2187 = vrot.slane %v1802, 4
      %v2188 = vrot.slane %v1803, 3
      %v2189 = vrot.slane %v1804, 2
      %v2190 = vrot.slane %v1805, 1
      %vm2191 = vcmask 1040384
      %v2192 = vsel %vm2191, %v1798, %v2184
      %vm2193 = vcmask 1042434
      %v2194 = vsel %vm2193, %v2185, %v2186
      %vm2195 = vcmask 1041408
      %v2196 = vsel %vm2195, %v2192, %v2194
      %vm2197 = vcmask 1044484
      %v2198 = vsel %vm2197, %v2187, %v2188
      %vm2199 = vcmask 1046534
      %v2200 = vsel %vm2199, %v2189, %v2190
      %vm2201 = vcmask 1045508
      %v2202 = vsel %vm2201, %v2198, %v2200
      %vm2203 = vcmask 1043456
      %v2204 = vsel %vm2203, %v2196, %v2202
      %2206 = vst [vmem:[#allocation2] sm:$0xff] %v2204
      %s2207 = smul.u32 4, %s21
      %p2208 = scmp.lt.s32.totalorder %s20, 1
      %s2209 = scalar_select %p2208, %s20, 1
      %p2210 = scmp.lt.s32.totalorder %s2207, 7
      %s2211 = scalar_select %p2210, %s2207, 7
      %s2212 = smul.addr %s2209, 8
      %s2213 = sadd.s32 %s2211, %s2212
      %s2214 = smul.addr %s2213, 8
      %s2215 = scalar_lea.vmem %s5, %s2214
      // Predicated region
      $region52: #{ss2d_forward.1} parent=39 // pred_check
        %p2216 = pneg %p160
      $region53: #{ss2d_forward.1} parent=39 // pred_check_branch
        %2218 = sbr.rel (%p2216) target = $region55
      $region54: #{ss2d_forward.1} parent=39 // pred_region
        %s2219 = smul.u32 4, %s21
      $region55: #{ss2d_forward.1} parent=39 // pred_fallthru
        _
    $region40: #{ss2d_forward.1} parent=5 // pred_fallthru
      _
    %p2220 = scmp.le.s32.totalorder 2, %s11
    // Predicated region
    $region56: #{ss2d_forward.1} parent=5 // pred_check
      %p2221 = pneg %p2220
    $region57: #{ss2d_forward.1} parent=5 // pred_check_branch
      %2223 = sbr.rel (%p2221) target = $region59
    $region58: #{ss2d_forward.1} parent=5 // pred_region
      %s2224 = ssub.s32 %s11, 2
      // Predicated region
      $region60: #{ss2d_forward.1} parent=58 // pred_check
        %p2225 = pneg %p166
      $region61: #{ss2d_forward.1} parent=58 // pred_check_branch
        %2227 = sbr.rel (%p2225) target = $region63
      $region62: #{ss2d_forward.1} parent=58 // pred_region
        %s2228 = smul.u32 4, %s23
        %p2229 = scmp.lt.s32.totalorder %s22, 1
        %s2230 = scalar_select %p2229, %s22, 1
        %p2231 = scmp.lt.s32.totalorder %s2228, 7
        %s2232 = scalar_select %p2231, %s2228, 7
        %s2233 = smul.addr %s2230, 8
        %s2234 = sadd.s32 %s2232, %s2233
        %s2235 = smul.addr %s2234, 8
        %s2236 = scalar_lea.vmem %s5, %s2235
      $region63: #{ss2d_forward.1} parent=58 // pred_fallthru
        _
    $region59: #{ss2d_forward.1} parent=5 // pred_fallthru
      _
  $region6: #{ss2d_forward.1} parent=0 // loop_footer
    %s15 = sadd.s32 1, %s11
  $region7: #{ss2d_forward.1} parent=0 // loop_footer_branch
    %10 = sbr.rel target = $region3
  $region8: #{ss2d_forward.1} parent=0 // loop_exit
    _

</llo_original>
